<compile_context>
chip_gen: v7x
topology: tpu7x:2x2x1
jax: 0.10.0
libtpu: 0.0.40
codegen_flags: <defaults>
</compile_context>

<pallas_src>
import math
from functools import partial

import jax
import jax.numpy as jnp
from jax import lax
from jax.experimental import pallas as pl
from jax.experimental.pallas import tpu as pltpu


# ---------------------------------------------------------------------------
# helpers: per-generation tile defaults + explicit scoped-VMEM budget
# ---------------------------------------------------------------------------
def _default_tiles():
    """(m_tile, q_tile, kv_tile). Bigger tiles amortize the ~0.35us/step grid
    overhead; v5e/v6e have 128 MiB VMEM, v7x only 64 MiB."""
    try:
        vmem = int(pltpu.get_tpu_info().vmem_capacity_bytes)
    except Exception:            # interpret mode / older jax -> conservative
        vmem = 64 << 20
    if vmem >= (100 << 20):      # v5e / v6e
        return 1024, 1024, 1024
    return 512, 512, 512         # v7x


def _vmem_limit(block_bytes, scratch_bytes=0):
    """Scoped-VMEM budget: double-buffered pipeline blocks + scratch with
    headroom, clamped to a range that is safe on every generation (the
    defaults are only 16 MiB on v5e / 32 MiB on v6e-v7x)."""
    need = 2 * block_bytes + scratch_bytes
    need = int(1.5 * need) + (4 << 20)
    return max(32 << 20, min(need, 48 << 20))


# ---------------------------------------------------------------------------
# Kernel 1: fused linear (x @ W + b) + ReLU
# ---------------------------------------------------------------------------
def _linear_relu_kernel(x_ref, w_ref, b_ref, o_ref, *, compute_dtype):
    x = x_ref[...].astype(compute_dtype)                       # bf16 MXU inputs
    y = jnp.dot(x, w_ref[...], preferred_element_type=jnp.float32)
    y = y + b_ref[...]
    o_ref[...] = jnp.maximum(y, 0.0).astype(o_ref.dtype)


def linear_relu(x2d, w, b, *, m_tile=512, compute_dtype=jnp.bfloat16,
                out_dtype=jnp.float32):
    """x2d: (M, F_in), w: (F_in, F_out), b: (F_out,) -> relu(x @ w + b)."""
    M, F_in = x2d.shape
    F_out = w.shape[1]
    tm = M if M <= m_tile else m_tile
    w_c = w.astype(compute_dtype)                 # halves weight DMA in bf16
    b2d = b.reshape(1, F_out).astype(jnp.float32)

    cb = jnp.dtype(compute_dtype).itemsize
    blk = (tm * F_in * x2d.dtype.itemsize + F_in * F_out * cb
           + F_out * 4 + tm * F_out * jnp.dtype(out_dtype).itemsize)
    # TODO(synk): for in_features >= ~1536, tile F_out/F_in (accumulator
    # scratch + "arbitrary" reduction axis) so the full weight block is not
    # kept resident (v7x 64 MiB VMEM).
    return pl.pallas_call(
        partial(_linear_relu_kernel, compute_dtype=compute_dtype),
        out_shape=jax.ShapeDtypeStruct((M, F_out), out_dtype),
        grid=(pl.cdiv(M, tm),),
        in_specs=[
            pl.BlockSpec((tm, F_in), lambda i: (i, 0)),
            pl.BlockSpec((F_in, F_out), lambda i: (0, 0)),
            pl.BlockSpec((1, F_out), lambda i: (0, 0)),
        ],
        out_specs=pl.BlockSpec((tm, F_out), lambda i: (i, 0)),
        compiler_params=pltpu.CompilerParams(
            dimension_semantics=("parallel",),
            vmem_limit_bytes=_vmem_limit(blk)),
    )(x2d, w_c, b2d)


# ---------------------------------------------------------------------------
# Kernel 2 (fast path): flash attention over Sk tiles + fused linear_o + ReLU
# ---------------------------------------------------------------------------
def _flash_sdpa_o_kernel(q_ref, k_ref, v_ref, wo_ref, bo_ref, o_ref,
                         m_ref, l_ref, acc_ref, *,
                         head_num, head_dim, seq_k, kv_tile, compute_dtype):
    ki = pl.program_id(2)

    @pl.when(ki == 0)
    def _():
        m_ref[...] = jnp.full_like(m_ref, -jnp.inf)
        l_ref[...] = jnp.zeros_like(l_ref)
        acc_ref[...] = jnp.zeros_like(acc_ref)

    q = q_ref[0].astype(compute_dtype)   # (tq, F); 1/sqrt(dk) already in W_q
    k = k_ref[0].astype(compute_dtype)   # (tk, F)
    v = v_ref[0].astype(compute_dtype)   # (tk, F)

    need_mask = (seq_k % kv_tile) != 0   # static
    if need_mask:
        kpos = ki * kv_tile + lax.broadcasted_iota(jnp.int32, (1, kv_tile), 1)
        kvalid = kpos < seq_k            # (1, tk) padded-key mask

    for h in range(head_num):            # static unroll; heads = lane slices
        lo = h * head_dim
        hi = lo + head_dim
        qh = q[:, lo:hi]
        kh = k[:, lo:hi]
        vh = v[:, lo:hi]
        # contract last dims directly -- no k transpose materialization
        s = lax.dot_general(qh, kh, (((1,), (1,)), ((), ())),
                            preferred_element_type=jnp.float32)   # (tq, tk)
        if need_mask:
            s = jnp.where(kvalid, s, -jnp.inf)

        m_prev = m_ref[h]                                          # (tq, 1)
        m_new = jnp.maximum(m_prev, jnp.max(s, axis=-1, keepdims=True))
        alpha = jnp.exp(m_prev - m_new)
        p = jnp.exp(s - m_new)
        l_ref[h] = alpha * l_ref[h] + jnp.sum(p, axis=-1, keepdims=True)
        acc_ref[h] = alpha * acc_ref[h] + jnp.dot(
            p.astype(compute_dtype), vh, preferred_element_type=jnp.float32)
        m_ref[h] = m_new

    @pl.when(ki == pl.num_programs(2) - 1)
    def _():
        # fused linear_o + ReLU epilogue:  relu(concat_h(acc_h / l_h) @ W_o + b)
        # expressed as a sum of per-head (tq,dk)@(dk,F) matmuls against W_o row
        # blocks, so no cross-lane concatenate and a single lane-dense store.
        y = None
        for h in range(head_num):
            lo = h * head_dim
            hi = lo + head_dim
            inv_l = pl.reciprocal(l_ref[h], approx=True)           # EUP slot
            ah = (acc_ref[h] * inv_l).astype(compute_dtype)        # (tq, dk)
            part = jnp.dot(ah, wo_ref[lo:hi, :],
                           preferred_element_type=jnp.float32)     # (tq, F)
            y = part if y is None else y + part
        y = jnp.maximum(y + bo_ref[...], 0.0)
        o_ref[0] = y.astype(o_ref.dtype)


def sdpa_fused_output_proj(qp, kp, vp, w_o, b_o, head_num, *,
                           q_tile=512, kv_tile=512,
                           compute_dtype=jnp.bfloat16):
    """qp: (B,Sq,F), kp/vp: (B,Sk,F) -> relu(attention(qp,kp,vp) @ W_o + b_o)."""
    B, Sq, F = qp.shape
    Sk = kp.shape[1]
    head_dim = F // head_num
    tq = Sq if Sq <= q_tile else q_tile
    tk = Sk if Sk <= kv_tile else kv_tile

    w_o_c = w_o.astype(compute_dtype)
    b_o2 = b_o.reshape(1, F).astype(jnp.float32)

    kernel = partial(_flash_sdpa_o_kernel, head_num=head_num,
                     head_dim=head_dim, seq_k=Sk, kv_tile=tk,
                     compute_dtype=compute_dtype)

    cb = jnp.dtype(compute_dtype).itemsize
    blk = (tq * F * qp.dtype.itemsize + 2 * tk * F * kp.dtype.itemsize
           + F * F * cb + F * 4 + tq * F * 4)
    scratch_bytes = head_num * tq * (2 * 128 + max(head_dim, 128)) * 4

    # TODO(synk): W_o/b_o blocks are grid-constant; pipeline_mode=pl.Buffered(1)
    # would halve their residency on VMEM-tight v7x configs.
    return pl.pallas_call(
        kernel,
        out_shape=jax.ShapeDtypeStruct((B, Sq, F), jnp.float32),
        grid=(B, pl.cdiv(Sq, tq), pl.cdiv(Sk, tk)),
        in_specs=[
            pl.BlockSpec((1, tq, F), lambda b, qi, ki: (b, qi, 0)),
            pl.BlockSpec((1, tk, F), lambda b, qi, ki: (b, ki, 0)),
            pl.BlockSpec((1, tk, F), lambda b, qi, ki: (b, ki, 0)),
            pl.BlockSpec((F, F), lambda b, qi, ki: (0, 0)),
            pl.BlockSpec((1, F), lambda b, qi, ki: (0, 0)),
        ],
        out_specs=pl.BlockSpec((1, tq, F), lambda b, qi, ki: (b, qi, 0)),
        scratch_shapes=[
            pltpu.VMEM((head_num, tq, 1), jnp.float32),         # running max
            pltpu.VMEM((head_num, tq, 1), jnp.float32),         # running denom
            pltpu.VMEM((head_num, tq, head_dim), jnp.float32),  # running acc
        ],
        compiler_params=pltpu.CompilerParams(
            dimension_semantics=("parallel", "parallel", "arbitrary"),
            vmem_limit_bytes=_vmem_limit(blk, scratch_bytes)),
    )(qp, kp, vp, w_o_c, b_o2)


# ---------------------------------------------------------------------------
# Kernel 3 (diagnostic path): attention that also returns the score tensor
# ---------------------------------------------------------------------------
def _sdpa_scores_kernel(q_ref, k_ref, v_ref, o_ref, attn_ref, *,
                        head_num, head_dim, compute_dtype):
    q = q_ref[0].astype(compute_dtype)   # (tq, F); scale already folded in
    k = k_ref[0].astype(compute_dtype)   # (Sk, F)
    v = v_ref[0].astype(compute_dtype)   # (Sk, F)
    for h in range(head_num):            # static unroll
        lo = h * head_dim
        hi = lo + head_dim
        s = lax.dot_general(q[:, lo:hi], k[:, lo:hi], (((1,), (1,)), ((), ())),
                            preferred_element_type=jnp.float32)   # (tq, Sk)
        m = jnp.max(s, axis=-1, keepdims=True)
        e = jnp.exp(s - m)
        attn = e * pl.reciprocal(jnp.sum(e, axis=-1, keepdims=True), approx=True)
        attn_ref[0, h] = attn.astype(attn_ref.dtype)
        yh = jnp.dot(attn.astype(compute_dtype), v[:, lo:hi],
                     preferred_element_type=jnp.float32)           # (tq, dk)
        o_ref[0, :, lo:hi] = yh.astype(o_ref.dtype)   # streamed per-head store


def sdpa_with_scores(qp, kp, vp, head_num, *, q_tile=256,
                     compute_dtype=jnp.bfloat16, attn_dtype=jnp.float32):
    B, Sq, F = qp.shape
    Sk = kp.shape[1]
    head_dim = F // head_num
    tq = Sq if Sq <= q_tile else q_tile
    y_dtype = qp.dtype        # keep the intermediate in the projection dtype

    kernel = partial(_sdpa_scores_kernel, head_num=head_num,
                     head_dim=head_dim, compute_dtype=compute_dtype)

    blk = (tq * F * qp.dtype.itemsize + 2 * Sk * F * kp.dtype.itemsize
           + tq * F * jnp.dtype(y_dtype).itemsize
           + head_num * tq * Sk * jnp.dtype(attn_dtype).itemsize)
    # TODO(synk): Sk-tiling this path (flash) would need a second
    # normalization pass over the emitted score tiles; full-Sk blocks with a
    # reduced q-tile are kept on this diagnostic path.
    return pl.pallas_call(
        kernel,
        out_shape=(jax.ShapeDtypeStruct((B, Sq, F), y_dtype),
                   jax.ShapeDtypeStruct((B, head_num, Sq, Sk), attn_dtype)),
        grid=(B, pl.cdiv(Sq, tq)),
        in_specs=[
            pl.BlockSpec((1, tq, F), lambda b, i: (b, i, 0)),
            pl.BlockSpec((1, Sk, F), lambda b, i: (b, 0, 0)),
            pl.BlockSpec((1, Sk, F), lambda b, i: (b, 0, 0)),
        ],
        out_specs=(
            pl.BlockSpec((1, tq, F), lambda b, i: (b, i, 0)),
            pl.BlockSpec((1, head_num, tq, Sk), lambda b, i: (b, 0, i, 0)),
        ),
        compiler_params=pltpu.CompilerParams(
            dimension_semantics=("parallel", "parallel"),
            vmem_limit_bytes=_vmem_limit(blk)),
    )(qp, kp, vp)


# ---------------------------------------------------------------------------
# MultiHeadAttention forward (glue in plain JAX, hot paths in Pallas)
# ---------------------------------------------------------------------------
def init_mha_params(key, in_features):
    """Deterministic init matching nn.Linear's U(-1/sqrt(in), 1/sqrt(in))."""
    bound = 1.0 / math.sqrt(in_features)
    params = {}
    for name in ("q", "k", "v", "o"):
        key, kw, kb = jax.random.split(key, 3)
        params[f"w_{name}"] = jax.random.uniform(
            kw, (in_features, in_features), jnp.float32, -bound, bound)
        params[f"b_{name}"] = jax.random.uniform(
            kb, (in_features,), jnp.float32, -bound, bound)
    return params


def multi_head_attention(params, q, k, v, head_num, *,
                         return_attention=True, self_attention=False,
                         compute_dtype=jnp.bfloat16, attn_dtype=jnp.float32,
                         m_tile=None, q_tile=None, kv_tile=None,
                         attn_q_tile=256):
    B, Sq, F = q.shape
    Sk = k.shape[1]
    head_dim = F // head_num

    dm, dq, dkv = _default_tiles()
    m_tile = m_tile or dm
    q_tile = q_tile or dq
    kv_tile = kv_tile or dkv

    # Fold 1/sqrt(dk) into the q projection (ReLU is positively homogeneous:
    # relu(s*(xW+b)) == s*relu(xW+b) for s > 0) -- removes an in-kernel VALU mul.
    scale = 1.0 / math.sqrt(head_dim)
    w_q = params["w_q"] * scale
    b_q = params["b_q"] * scale

    proj_dtype = compute_dtype   # bf16 intermediates halve q/k/v HBM traffic

    if self_attention or (q is k and k is v):
        # fused QKV projection: activation read once, one (F, 3F) matmul
        w_qkv = jnp.concatenate([w_q, params["w_k"], params["w_v"]], axis=1)
        b_qkv = jnp.concatenate([b_q, params["b_k"], params["b_v"]], axis=0)
        qkv = linear_relu(q.reshape(B * Sq, F), w_qkv, b_qkv, m_tile=m_tile,
                          compute_dtype=compute_dtype, out_dtype=proj_dtype)
        qkv = qkv.reshape(B, Sq, 3 * F)
        qp, kp, vp = qkv[..., :F], qkv[..., F:2 * F], qkv[..., 2 * F:]
    else:
        qp = linear_relu(q.reshape(B * Sq, F), w_q, b_q, m_tile=m_tile,
                         compute_dtype=compute_dtype,
                         out_dtype=proj_dtype).reshape(B, Sq, F)
        kp = linear_relu(k.reshape(B * Sk, F), params["w_k"], params["b_k"],
                         m_tile=m_tile, compute_dtype=compute_dtype,
                         out_dtype=proj_dtype).reshape(B, Sk, F)
        vp = linear_relu(v.reshape(B * Sk, F), params["w_v"], params["b_v"],
                         m_tile=m_tile, compute_dtype=compute_dtype,
                         out_dtype=proj_dtype).reshape(B, Sk, F)

    # TODO(synk): the optional `mask` argument (masked_fill(mask==0, -65500))
    # of the PyTorch module is not wired through; this reproduces mask=None.
    if return_attention:
        y, attention_scores = sdpa_with_scores(
            qp, kp, vp, head_num, q_tile=min(q_tile, attn_q_tile),
            compute_dtype=compute_dtype, attn_dtype=attn_dtype)
        y = linear_relu(y.reshape(B * Sq, F), params["w_o"], params["b_o"],
                        m_tile=m_tile, compute_dtype=compute_dtype,
                        out_dtype=jnp.float32).reshape(B, Sq, F)
        return y, attention_scores

    # fast path: flash (Sk-tiled) attention with the output projection fused in
    y = sdpa_fused_output_proj(qp, kp, vp, params["w_o"], params["b_o"],
                               head_num, q_tile=q_tile, kv_tile=kv_tile,
                               compute_dtype=compute_dtype)
    return y


# ---------------------------------------------------------------------------
# Pure-JAX reference (mirrors the PyTorch module exactly) for correctness
# ---------------------------------------------------------------------------
def _reshape_to_batches(x, head_num):
    B, S, F = x.shape
    sub = F // head_num
    return x.reshape(B, S, head_num, sub).transpose(0, 2, 1, 3).reshape(
        B * head_num, S, sub)


def mha_reference(params, q, k, v, head_num):
    def lin_relu(x, w, b):
        return jnp.maximum(x @ w + b, 0.0)

    B, Sq, F = q.shape
    Sk = k.shape[1]
    qp = lin_relu(q, params["w_q"], params["b_q"])
    kp = lin_relu(k, params["w_k"], params["b_k"])
    vp = lin_relu(v, params["w_v"], params["b_v"])
    qh = _reshape_to_batches(qp, head_num)
    kh = _reshape_to_batches(kp, head_num)
    vh = _reshape_to_batches(vp, head_num)
    dk = qh.shape[-1]
    scores = jnp.einsum("bqd,bkd->bqk", qh, kh) / math.sqrt(dk)
    attn = jax.nn.softmax(scores, axis=-1)
    yh = jnp.einsum("bqk,bkd->bqd", attn, vh)
    y = yh.reshape(B, head_num, Sq, dk).transpose(0, 2, 1, 3).reshape(B, Sq, F)
    y = lin_relu(y, params["w_o"], params["b_o"])
    return y, attn.reshape(B, head_num, Sq, Sk)


if __name__ == "__main__":
    B, S, F, H = 2, 8, 32, 4

    key = jax.random.PRNGKey(0)
    kq, kk, kv, kp = jax.random.split(key, 4)
    q = jax.random.normal(kq, (B, S, F), jnp.float32)
    k = jax.random.normal(kk, (B, S, F), jnp.float32)
    v = jax.random.normal(kv, (B, S, F), jnp.float32)
    params = init_mha_params(kp, F)

    y_ref, attn_ref = mha_reference(params, q, k, v, H)

    # 1) default bf16-compute path with the attention-score output
    fwd = jax.jit(partial(multi_head_attention, head_num=H,
                          return_attention=True))
    y, attn = fwd(params, q, k, v)
    jax.block_until_ready((y, attn))
    assert y.shape == (B, S, F) and attn.shape == (B, H, S, S)
    assert jnp.allclose(y, y_ref, atol=3e-2, rtol=3e-2), \
        float(jnp.max(jnp.abs(y - y_ref)))
    assert jnp.allclose(attn, attn_ref, atol=2e-2, rtol=2e-2), \
        float(jnp.max(jnp.abs(attn - attn_ref)))

    # 2) fast path: flash Sk tiling + fused linear_o, no score writeback
    fwd_fast = jax.jit(partial(multi_head_attention, head_num=H,
                               return_attention=False))
    y_fast = fwd_fast(params, q, k, v)
    jax.block_until_ready(y_fast)
    assert jnp.allclose(y_fast, y_ref, atol=3e-2, rtol=3e-2), \
        float(jnp.max(jnp.abs(y_fast - y_ref)))

    # 3) f32-compute path: near-exact match to the PyTorch-equivalent reference
    fwd_f32 = jax.jit(partial(multi_head_attention, head_num=H,
                              return_attention=False,
                              compute_dtype=jnp.float32))
    y_f32 = fwd_f32(params, q, k, v)
    jax.block_until_ready(y_f32)
    assert jnp.allclose(y_f32, y_ref, atol=5e-3, rtol=5e-3), \
        float(jnp.max(jnp.abs(y_f32 - y_ref)))

    # 4) self-attention with the fused (F, 3F) QKV projection
    y_ref_sa, attn_ref_sa = mha_reference(params, q, q, q, H)
    fwd_sa = jax.jit(partial(multi_head_attention, head_num=H,
                             return_attention=True, self_attention=True))
    y_sa, attn_sa = fwd_sa(params, q, q, q)
    jax.block_until_ready((y_sa, attn_sa))
    assert jnp.allclose(y_sa, y_ref_sa, atol=3e-2, rtol=3e-2), \
        float(jnp.max(jnp.abs(y_sa - y_ref_sa)))
    assert jnp.allclose(attn_sa, attn_ref_sa, atol=2e-2, rtol=2e-2), \
        float(jnp.max(jnp.abs(attn_sa - attn_ref_sa)))

    print("KERNEL_OK")
</pallas_src>

<mosaic_0001>
module attributes {stable_mosaic.version = 11 : i64} {
  func.func @_linear_relu_kernel(%arg0: i32, %arg1: memref<16x32xf32, #tpu.memory_space<vmem>>, %arg2: memref<32x32xbf16, #tpu.memory_space<vmem>>, %arg3: memref<1x32xf32, #tpu.memory_space<vmem>>, %arg4: memref<16x32xbf16, #tpu.memory_space<vmem>>) attributes {dimension_semantics = [#tpu.dimension_semantics<parallel>], iteration_bounds = array<i64: 1>, scalar_prefetch = 0 : i64, scratch_operands = 0 : i64, tpu.core_type = #tpu.core_type<tc>, window_params = [{transform_indices = @transform_0, window_bounds = array<i64: 16, 32>}, {pipeline_mode = #tpu.pipeline_mode<synchronous>, transform_indices = @transform_1, window_bounds = array<i64: 32, 32>}, {pipeline_mode = #tpu.pipeline_mode<synchronous>, transform_indices = @transform_2, window_bounds = array<i64: 1, 32>}, {transform_indices = @transform_3, window_bounds = array<i64: 16, 32>}]} {
    %c0 = arith.constant 0 : index
    %c0_0 = arith.constant 0 : index
    %0 = vector.load %arg1[%c0, %c0_0] : memref<16x32xf32, #tpu.memory_space<vmem>>, vector<16x32xf32>
    %1 = arith.truncf %0 : vector<16x32xf32> to vector<16x32xbf16>
    %c0_1 = arith.constant 0 : index
    %c0_2 = arith.constant 0 : index
    %2 = vector.load %arg2[%c0_1, %c0_2] : memref<32x32xbf16, #tpu.memory_space<vmem>>, vector<32x32xbf16>
    %cst = arith.constant dense<0.000000e+00> : vector<16x32xf32>
    %3 = tpu.matmul %1, %2, %cst {dimension_numbers = #tpu.dot_dimension_numbers<[1], [0], [0], [1], [0, 0, 1, 1], [], []>} : vector<16x32xbf16>, vector<32x32xbf16>, vector<16x32xf32> -> vector<16x32xf32>
    %c0_3 = arith.constant 0 : index
    %c0_4 = arith.constant 0 : index
    %4 = vector.load %arg3[%c0_3, %c0_4] : memref<1x32xf32, #tpu.memory_space<vmem>>, vector<1x32xf32>
    %5 = vector.broadcast %4 : vector<1x32xf32> to vector<16x32xf32>
    %6 = arith.addf %3, %5 : vector<16x32xf32>
    %cst_5 = arith.constant 0.000000e+00 : f32
    %7 = vector.broadcast %cst_5 : f32 to vector<16x32xf32>
    %8 = arith.maximumf %6, %7 : vector<16x32xf32>
    %9 = arith.truncf %8 : vector<16x32xf32> to vector<16x32xbf16>
    %c0_6 = arith.constant 0 : index
    %c0_7 = arith.constant 0 : index
    %10 = vector.load %arg4[%c0_6, %c0_7] : memref<16x32xbf16, #tpu.memory_space<vmem>>, vector<16x32xbf16>
    tpu.vector_store %arg4[%c0_6, %c0_7], %9 {strides = array<i32>} : memref<16x32xbf16, #tpu.memory_space<vmem>>, vector<16x32xbf16>,
    return
  }
  func.func @transform_0(%arg0: i32) -> (i32, i32) {
    %c0_i32 = arith.constant 0 : i32
    %c0_i32_0 = arith.constant 0 : i32
    return %arg0, %c0_i32 : i32, i32
  }
  func.func @transform_1(%arg0: i32) -> (i32, i32) {
    %c0_i32 = arith.constant 0 : i32
    %c0_i32_0 = arith.constant 0 : i32
    %c0_i32_1 = arith.constant 0 : i32
    return %c0_i32, %c0_i32_0 : i32, i32
  }
  func.func @transform_2(%arg0: i32) -> (i32, i32) {
    %c0_i32 = arith.constant 0 : i32
    %c0_i32_0 = arith.constant 0 : i32
    %c0_i32_1 = arith.constant 0 : i32
    return %c0_i32, %c0_i32_0 : i32, i32
  }
  func.func @transform_3(%arg0: i32) -> (i32, i32) {
    %c0_i32 = arith.constant 0 : i32
    %c0_i32_0 = arith.constant 0 : i32
    return %arg0, %c0_i32 : i32, i32
  }
}

module attributes {stable_mosaic.version = 11 : i64} {
  func.func @_sdpa_scores_kernel(%arg0: i32, %arg1: i32, %arg2: memref<1x8x32xbf16, #tpu.memory_space<vmem>>, %arg3: memref<1x8x32xbf16, #tpu.memory_space<vmem>>, %arg4: memref<1x8x32xbf16, #tpu.memory_space<vmem>>, %arg5: memref<1x8x32xbf16, #tpu.memory_space<vmem>>, %arg6: memref<1x4x8x8xf32, #tpu.memory_space<vmem>>) attributes {dimension_semantics = [#tpu.dimension_semantics<parallel>, #tpu.dimension_semantics<parallel>], iteration_bounds = array<i64: 2, 1>, scalar_prefetch = 0 : i64, scratch_operands = 0 : i64, tpu.core_type = #tpu.core_type<tc>, window_params = [{transform_indices = @transform_0, window_bounds = array<i64: 1, 8, 32>}, {transform_indices = @transform_1, window_bounds = array<i64: 1, 8, 32>}, {transform_indices = @transform_2, window_bounds = array<i64: 1, 8, 32>}, {transform_indices = @transform_3, window_bounds = array<i64: 1, 8, 32>}, {transform_indices = @transform_4, window_bounds = array<i64: 1, 4, 8, 8>}]} {
    %c0 = arith.constant 0 : index
    %c0_0 = arith.constant 0 : index
    %c0_1 = arith.constant 0 : index
    %0 = vector.load %arg2[%c0, %c0_0, %c0_1] : memref<1x8x32xbf16, #tpu.memory_space<vmem>>, vector<1x8x32xbf16>
    %1 = vector.shape_cast %0 : vector<1x8x32xbf16> to vector<8x32xbf16>
    %c0_2 = arith.constant 0 : index
    %c0_3 = arith.constant 0 : index
    %c0_4 = arith.constant 0 : index
    %2 = vector.load %arg3[%c0_2, %c0_3, %c0_4] : memref<1x8x32xbf16, #tpu.memory_space<vmem>>, vector<1x8x32xbf16>
    %3 = vector.shape_cast %2 : vector<1x8x32xbf16> to vector<8x32xbf16>
    %c0_5 = arith.constant 0 : index
    %c0_6 = arith.constant 0 : index
    %c0_7 = arith.constant 0 : index
    %4 = vector.load %arg4[%c0_5, %c0_6, %c0_7] : memref<1x8x32xbf16, #tpu.memory_space<vmem>>, vector<1x8x32xbf16>
    %5 = vector.shape_cast %4 : vector<1x8x32xbf16> to vector<8x32xbf16>
    %6 = vector.extract_strided_slice %1 {offsets = [0, 0], sizes = [8, 8], strides = [1, 1]} : vector<8x32xbf16> to vector<8x8xbf16>
    %7 = vector.extract_strided_slice %3 {offsets = [0, 0], sizes = [8, 8], strides = [1, 1]} : vector<8x32xbf16> to vector<8x8xbf16>
    %cst = arith.constant dense<0.000000e+00> : vector<8x8xf32>
    %8 = tpu.matmul %6, %7, %cst {dimension_numbers = #tpu.dot_dimension_numbers<[1], [1], [0], [0], [0, 0, 1, 0], [], []>} : vector<8x8xbf16>, vector<8x8xbf16>, vector<8x8xf32> -> vector<8x8xf32>
    %cst_8 = arith.constant dense<0xFF800000> : vector<8xf32>
    %9 = vector.multi_reduction <maximumf>, %8, %cst_8 [1] : vector<8x8xf32> to vector<8xf32>
    %10 = vector.shape_cast %9 : vector<8xf32> to vector<8x1xf32>
    %11 = vector.broadcast %10 : vector<8x1xf32> to vector<8x8xf32>
    %12 = arith.subf %8, %11 : vector<8x8xf32>
    %13 = math.exp %12 : vector<8x8xf32>
    %cst_9 = arith.constant dense<0.000000e+00> : vector<8xf32>
    %14 = vector.multi_reduction <add>, %13, %cst_9 [1] : vector<8x8xf32> to vector<8xf32>
    %15 = vector.shape_cast %14 : vector<8xf32> to vector<8x1xf32>
    %16 = tpu.reciprocal %15 {approx = true} : vector<8x1xf32> -> vector<8x1xf32>
    %17 = vector.broadcast %16 : vector<8x1xf32> to vector<8x8xf32>
    %18 = arith.mulf %13, %17 : vector<8x8xf32>
    %c0_10 = arith.constant 0 : index
    %c0_11 = arith.constant 0 : index
    %c0_12 = arith.constant 0 : index
    %c0_13 = arith.constant 0 : index
    %19 = vector.load %arg6[%c0_10, %c0_11, %c0_12, %c0_13] : memref<1x4x8x8xf32, #tpu.memory_space<vmem>>, vector<1x1x8x8xf32>
    %20 = vector.shape_cast %19 : vector<1x1x8x8xf32> to vector<8x8xf32>
    %21 = vector.shape_cast %18 : vector<8x8xf32> to vector<1x1x8x8xf32>
    tpu.vector_store %arg6[%c0_10, %c0_11, %c0_12, %c0_13], %21 {strides = array<i32>} : memref<1x4x8x8xf32, #tpu.memory_space<vmem>>, vector<1x1x8x8xf32>,
    %22 = arith.truncf %18 : vector<8x8xf32> to vector<8x8xbf16>
    %23 = vector.extract_strided_slice %5 {offsets = [0, 0], sizes = [8, 8], strides = [1, 1]} : vector<8x32xbf16> to vector<8x8xbf16>
    %cst_14 = arith.constant dense<0.000000e+00> : vector<8x8xf32>
    %24 = tpu.matmul %22, %23, %cst_14 {dimension_numbers = #tpu.dot_dimension_numbers<[1], [0], [0], [1], [0, 0, 1, 1], [], []>} : vector<8x8xbf16>, vector<8x8xbf16>, vector<8x8xf32> -> vector<8x8xf32>
    %25 = arith.truncf %24 : vector<8x8xf32> to vector<8x8xbf16>
    %c0_15 = arith.constant 0 : index
    %c0_16 = arith.constant 0 : index
    %c0_17 = arith.constant 0 : index
    %26 = vector.load %arg5[%c0_15, %c0_16, %c0_17] : memref<1x8x32xbf16, #tpu.memory_space<vmem>>, vector<1x8x8xbf16>
    %27 = vector.shape_cast %26 : vector<1x8x8xbf16> to vector<8x8xbf16>
    %28 = vector.shape_cast %25 : vector<8x8xbf16> to vector<1x8x8xbf16>
    tpu.vector_store %arg5[%c0_15, %c0_16, %c0_17], %28 {strides = array<i32>} : memref<1x8x32xbf16, #tpu.memory_space<vmem>>, vector<1x8x8xbf16>,
    %29 = vector.extract_strided_slice %1 {offsets = [0, 8], sizes = [8, 8], strides = [1, 1]} : vector<8x32xbf16> to vector<8x8xbf16>
    %30 = vector.extract_strided_slice %3 {offsets = [0, 8], sizes = [8, 8], strides = [1, 1]} : vector<8x32xbf16> to vector<8x8xbf16>
    %cst_18 = arith.constant dense<0.000000e+00> : vector<8x8xf32>
    %31 = tpu.matmul %29, %30, %cst_18 {dimension_numbers = #tpu.dot_dimension_numbers<[1], [1], [0], [0], [0, 0, 1, 0], [], []>} : vector<8x8xbf16>, vector<8x8xbf16>, vector<8x8xf32> -> vector<8x8xf32>
    %cst_19 = arith.constant dense<0xFF800000> : vector<8xf32>
    %32 = vector.multi_reduction <maximumf>, %31, %cst_19 [1] : vector<8x8xf32> to vector<8xf32>
    %33 = vector.shape_cast %32 : vector<8xf32> to vector<8x1xf32>
    %34 = vector.broadcast %33 : vector<8x1xf32> to vector<8x8xf32>
    %35 = arith.subf %31, %34 : vector<8x8xf32>
    %36 = math.exp %35 : vector<8x8xf32>
    %cst_20 = arith.constant dense<0.000000e+00> : vector<8xf32>
    %37 = vector.multi_reduction <add>, %36, %cst_20 [1] : vector<8x8xf32> to vector<8xf32>
    %38 = vector.shape_cast %37 : vector<8xf32> to vector<8x1xf32>
    %39 = tpu.reciprocal %38 {approx = true} : vector<8x1xf32> -> vector<8x1xf32>
    %40 = vector.broadcast %39 : vector<8x1xf32> to vector<8x8xf32>
    %41 = arith.mulf %36, %40 : vector<8x8xf32>
    %c0_21 = arith.constant 0 : index
    %c1 = arith.constant 1 : index
    %c0_22 = arith.constant 0 : index
    %c0_23 = arith.constant 0 : index
    %42 = vector.load %arg6[%c0_21, %c1, %c0_22, %c0_23] : memref<1x4x8x8xf32, #tpu.memory_space<vmem>>, vector<1x1x8x8xf32>
    %43 = vector.shape_cast %42 : vector<1x1x8x8xf32> to vector<8x8xf32>
    %44 = vector.shape_cast %41 : vector<8x8xf32> to vector<1x1x8x8xf32>
    tpu.vector_store %arg6[%c0_21, %c1, %c0_22, %c0_23], %44 {strides = array<i32>} : memref<1x4x8x8xf32, #tpu.memory_space<vmem>>, vector<1x1x8x8xf32>,
    %45 = arith.truncf %41 : vector<8x8xf32> to vector<8x8xbf16>
    %46 = vector.extract_strided_slice %5 {offsets = [0, 8], sizes = [8, 8], strides = [1, 1]} : vector<8x32xbf16> to vector<8x8xbf16>
    %cst_24 = arith.constant dense<0.000000e+00> : vector<8x8xf32>
    %47 = tpu.matmul %45, %46, %cst_24 {dimension_numbers = #tpu.dot_dimension_numbers<[1], [0], [0], [1], [0, 0, 1, 1], [], []>} : vector<8x8xbf16>, vector<8x8xbf16>, vector<8x8xf32> -> vector<8x8xf32>
    %48 = arith.truncf %47 : vector<8x8xf32> to vector<8x8xbf16>
    %c0_25 = arith.constant 0 : index
    %c0_26 = arith.constant 0 : index
    %c8 = arith.constant 8 : index
    %49 = vector.load %arg5[%c0_25, %c0_26, %c8] : memref<1x8x32xbf16, #tpu.memory_space<vmem>>, vector<1x8x8xbf16>
    %50 = vector.shape_cast %49 : vector<1x8x8xbf16> to vector<8x8xbf16>
    %51 = vector.shape_cast %48 : vector<8x8xbf16> to vector<1x8x8xbf16>
    tpu.vector_store %arg5[%c0_25, %c0_26, %c8], %51 {strides = array<i32>} : memref<1x8x32xbf16, #tpu.memory_space<vmem>>, vector<1x8x8xbf16>,
    %52 = vector.extract_strided_slice %1 {offsets = [0, 16], sizes = [8, 8], strides = [1, 1]} : vector<8x32xbf16> to vector<8x8xbf16>
    %53 = vector.extract_strided_slice %3 {offsets = [0, 16], sizes = [8, 8], strides = [1, 1]} : vector<8x32xbf16> to vector<8x8xbf16>
    %cst_27 = arith.constant dense<0.000000e+00> : vector<8x8xf32>
    %54 = tpu.matmul %52, %53, %cst_27 {dimension_numbers = #tpu.dot_dimension_numbers<[1], [1], [0], [0], [0, 0, 1, 0], [], []>} : vector<8x8xbf16>, vector<8x8xbf16>, vector<8x8xf32> -> vector<8x8xf32>
    %cst_28 = arith.constant dense<0xFF800000> : vector<8xf32>
    %55 = vector.multi_reduction <maximumf>, %54, %cst_28 [1] : vector<8x8xf32> to vector<8xf32>
    %56 = vector.shape_cast %55 : vector<8xf32> to vector<8x1xf32>
    %57 = vector.broadcast %56 : vector<8x1xf32> to vector<8x8xf32>
    %58 = arith.subf %54, %57 : vector<8x8xf32>
    %59 = math.exp %58 : vector<8x8xf32>
    %cst_29 = arith.constant dense<0.000000e+00> : vector<8xf32>
    %60 = vector.multi_reduction <add>, %59, %cst_29 [1] : vector<8x8xf32> to vector<8xf32>
    %61 = vector.shape_cast %60 : vector<8xf32> to vector<8x1xf32>
    %62 = tpu.reciprocal %61 {approx = true} : vector<8x1xf32> -> vector<8x1xf32>
    %63 = vector.broadcast %62 : vector<8x1xf32> to vector<8x8xf32>
    %64 = arith.mulf %59, %63 : vector<8x8xf32>
    %c0_30 = arith.constant 0 : index
    %c2 = arith.constant 2 : index
    %c0_31 = arith.constant 0 : index
    %c0_32 = arith.constant 0 : index
    %65 = vector.load %arg6[%c0_30, %c2, %c0_31, %c0_32] : memref<1x4x8x8xf32, #tpu.memory_space<vmem>>, vector<1x1x8x8xf32>
    %66 = vector.shape_cast %65 : vector<1x1x8x8xf32> to vector<8x8xf32>
    %67 = vector.shape_cast %64 : vector<8x8xf32> to vector<1x1x8x8xf32>
    tpu.vector_store %arg6[%c0_30, %c2, %c0_31, %c0_32], %67 {strides = array<i32>} : memref<1x4x8x8xf32, #tpu.memory_space<vmem>>, vector<1x1x8x8xf32>,
    %68 = arith.truncf %64 : vector<8x8xf32> to vector<8x8xbf16>
    %69 = vector.extract_strided_slice %5 {offsets = [0, 16], sizes = [8, 8], strides = [1, 1]} : vector<8x32xbf16> to vector<8x8xbf16>
    %cst_33 = arith.constant dense<0.000000e+00> : vector<8x8xf32>
    %70 = tpu.matmul %68, %69, %cst_33 {dimension_numbers = #tpu.dot_dimension_numbers<[1], [0], [0], [1], [0, 0, 1, 1], [], []>} : vector<8x8xbf16>, vector<8x8xbf16>, vector<8x8xf32> -> vector<8x8xf32>
    %71 = arith.truncf %70 : vector<8x8xf32> to vector<8x8xbf16>
    %c0_34 = arith.constant 0 : index
    %c0_35 = arith.constant 0 : index
    %c16 = arith.constant 16 : index
    %72 = vector.load %arg5[%c0_34, %c0_35, %c16] : memref<1x8x32xbf16, #tpu.memory_space<vmem>>, vector<1x8x8xbf16>
    %73 = vector.shape_cast %72 : vector<1x8x8xbf16> to vector<8x8xbf16>
    %74 = vector.shape_cast %71 : vector<8x8xbf16> to vector<1x8x8xbf16>
    tpu.vector_store %arg5[%c0_34, %c0_35, %c16], %74 {strides = array<i32>} : memref<1x8x32xbf16, #tpu.memory_space<vmem>>, vector<1x8x8xbf16>,
    %75 = vector.extract_strided_slice %1 {offsets = [0, 24], sizes = [8, 8], strides = [1, 1]} : vector<8x32xbf16> to vector<8x8xbf16>
    %76 = vector.extract_strided_slice %3 {offsets = [0, 24], sizes = [8, 8], strides = [1, 1]} : vector<8x32xbf16> to vector<8x8xbf16>
    %cst_36 = arith.constant dense<0.000000e+00> : vector<8x8xf32>
    %77 = tpu.matmul %75, %76, %cst_36 {dimension_numbers = #tpu.dot_dimension_numbers<[1], [1], [0], [0], [0, 0, 1, 0], [], []>} : vector<8x8xbf16>, vector<8x8xbf16>, vector<8x8xf32> -> vector<8x8xf32>
    %cst_37 = arith.constant dense<0xFF800000> : vector<8xf32>
    %78 = vector.multi_reduction <maximumf>, %77, %cst_37 [1] : vector<8x8xf32> to vector<8xf32>
    %79 = vector.shape_cast %78 : vector<8xf32> to vector<8x1xf32>
    %80 = vector.broadcast %79 : vector<8x1xf32> to vector<8x8xf32>
    %81 = arith.subf %77, %80 : vector<8x8xf32>
    %82 = math.exp %81 : vector<8x8xf32>
    %cst_38 = arith.constant dense<0.000000e+00> : vector<8xf32>
    %83 = vector.multi_reduction <add>, %82, %cst_38 [1] : vector<8x8xf32> to vector<8xf32>
    %84 = vector.shape_cast %83 : vector<8xf32> to vector<8x1xf32>
    %85 = tpu.reciprocal %84 {approx = true} : vector<8x1xf32> -> vector<8x1xf32>
    %86 = vector.broadcast %85 : vector<8x1xf32> to vector<8x8xf32>
    %87 = arith.mulf %82, %86 : vector<8x8xf32>
    %c0_39 = arith.constant 0 : index
    %c3 = arith.constant 3 : index
    %c0_40 = arith.constant 0 : index
    %c0_41 = arith.constant 0 : index
    %88 = vector.load %arg6[%c0_39, %c3, %c0_40, %c0_41] : memref<1x4x8x8xf32, #tpu.memory_space<vmem>>, vector<1x1x8x8xf32>
    %89 = vector.shape_cast %88 : vector<1x1x8x8xf32> to vector<8x8xf32>
    %90 = vector.shape_cast %87 : vector<8x8xf32> to vector<1x1x8x8xf32>
    tpu.vector_store %arg6[%c0_39, %c3, %c0_40, %c0_41], %90 {strides = array<i32>} : memref<1x4x8x8xf32, #tpu.memory_space<vmem>>, vector<1x1x8x8xf32>,
    %91 = arith.truncf %87 : vector<8x8xf32> to vector<8x8xbf16>
    %92 = vector.extract_strided_slice %5 {offsets = [0, 24], sizes = [8, 8], strides = [1, 1]} : vector<8x32xbf16> to vector<8x8xbf16>
    %cst_42 = arith.constant dense<0.000000e+00> : vector<8x8xf32>
    %93 = tpu.matmul %91, %92, %cst_42 {dimension_numbers = #tpu.dot_dimension_numbers<[1], [0], [0], [1], [0, 0, 1, 1], [], []>} : vector<8x8xbf16>, vector<8x8xbf16>, vector<8x8xf32> -> vector<8x8xf32>
    %94 = arith.truncf %93 : vector<8x8xf32> to vector<8x8xbf16>
    %c0_43 = arith.constant 0 : index
    %c0_44 = arith.constant 0 : index
    %c24 = arith.constant 24 : index
    %95 = vector.load %arg5[%c0_43, %c0_44, %c24] : memref<1x8x32xbf16, #tpu.memory_space<vmem>>, vector<1x8x8xbf16>
    %96 = vector.shape_cast %95 : vector<1x8x8xbf16> to vector<8x8xbf16>
    %97 = vector.shape_cast %94 : vector<8x8xbf16> to vector<1x8x8xbf16>
    tpu.vector_store %arg5[%c0_43, %c0_44, %c24], %97 {strides = array<i32>} : memref<1x8x32xbf16, #tpu.memory_space<vmem>>, vector<1x8x8xbf16>,
    return
  }
  func.func @transform_0(%arg0: i32, %arg1: i32) -> (i32, i32, i32) {
    %c0_i32 = arith.constant 0 : i32
    %c0_i32_0 = arith.constant 0 : i32
    return %arg0, %arg1, %c0_i32 : i32, i32, i32
  }
  func.func @transform_1(%arg0: i32, %arg1: i32) -> (i32, i32, i32) {
    %c0_i32 = arith.constant 0 : i32
    %c0_i32_0 = arith.constant 0 : i32
    %c0_i32_1 = arith.constant 0 : i32
    return %arg0, %c0_i32, %c0_i32_0 : i32, i32, i32
  }
  func.func @transform_2(%arg0: i32, %arg1: i32) -> (i32, i32, i32) {
    %c0_i32 = arith.constant 0 : i32
    %c0_i32_0 = arith.constant 0 : i32
    %c0_i32_1 = arith.constant 0 : i32
    return %arg0, %c0_i32, %c0_i32_0 : i32, i32, i32
  }
  func.func @transform_3(%arg0: i32, %arg1: i32) -> (i32, i32, i32) {
    %c0_i32 = arith.constant 0 : i32
    %c0_i32_0 = arith.constant 0 : i32
    return %arg0, %arg1, %c0_i32 : i32, i32, i32
  }
  func.func @transform_4(%arg0: i32, %arg1: i32) -> (i32, i32, i32, i32) {
    %c0_i32 = arith.constant 0 : i32
    %c0_i32_0 = arith.constant 0 : i32
    %c0_i32_1 = arith.constant 0 : i32
    return %arg0, %c0_i32, %arg1, %c0_i32_0 : i32, i32, i32, i32
  }
}

module attributes {stable_mosaic.version = 11 : i64} {
  func.func @_linear_relu_kernel(%arg0: i32, %arg1: memref<16x32xbf16, #tpu.memory_space<vmem>>, %arg2: memref<32x32xbf16, #tpu.memory_space<vmem>>, %arg3: memref<1x32xf32, #tpu.memory_space<vmem>>, %arg4: memref<16x32xf32, #tpu.memory_space<vmem>>) attributes {dimension_semantics = [#tpu.dimension_semantics<parallel>], iteration_bounds = array<i64: 1>, scalar_prefetch = 0 : i64, scratch_operands = 0 : i64, tpu.core_type = #tpu.core_type<tc>, window_params = [{transform_indices = @transform_0, window_bounds = array<i64: 16, 32>}, {pipeline_mode = #tpu.pipeline_mode<synchronous>, transform_indices = @transform_1, window_bounds = array<i64: 32, 32>}, {pipeline_mode = #tpu.pipeline_mode<synchronous>, transform_indices = @transform_2, window_bounds = array<i64: 1, 32>}, {transform_indices = @transform_3, window_bounds = array<i64: 16, 32>}]} {
    %c0 = arith.constant 0 : index
    %c0_0 = arith.constant 0 : index
    %0 = vector.load %arg1[%c0, %c0_0] : memref<16x32xbf16, #tpu.memory_space<vmem>>, vector<16x32xbf16>
    %c0_1 = arith.constant 0 : index
    %c0_2 = arith.constant 0 : index
    %1 = vector.load %arg2[%c0_1, %c0_2] : memref<32x32xbf16, #tpu.memory_space<vmem>>, vector<32x32xbf16>
    %cst = arith.constant dense<0.000000e+00> : vector<16x32xf32>
    %2 = tpu.matmul %0, %1, %cst {dimension_numbers = #tpu.dot_dimension_numbers<[1], [0], [0], [1], [0, 0, 1, 1], [], []>} : vector<16x32xbf16>, vector<32x32xbf16>, vector<16x32xf32> -> vector<16x32xf32>
    %c0_3 = arith.constant 0 : index
    %c0_4 = arith.constant 0 : index
    %3 = vector.load %arg3[%c0_3, %c0_4] : memref<1x32xf32, #tpu.memory_space<vmem>>, vector<1x32xf32>
    %4 = vector.broadcast %3 : vector<1x32xf32> to vector<16x32xf32>
    %5 = arith.addf %2, %4 : vector<16x32xf32>
    %cst_5 = arith.constant 0.000000e+00 : f32
    %6 = vector.broadcast %cst_5 : f32 to vector<16x32xf32>
    %7 = arith.maximumf %5, %6 : vector<16x32xf32>
    %c0_6 = arith.constant 0 : index
    %c0_7 = arith.constant 0 : index
    %8 = vector.load %arg4[%c0_6, %c0_7] : memref<16x32xf32, #tpu.memory_space<vmem>>, vector<16x32xf32>
    tpu.vector_store %arg4[%c0_6, %c0_7], %7 {strides = array<i32>} : memref<16x32xf32, #tpu.memory_space<vmem>>, vector<16x32xf32>,
    return
  }
  func.func @transform_0(%arg0: i32) -> (i32, i32) {
    %c0_i32 = arith.constant 0 : i32
    %c0_i32_0 = arith.constant 0 : i32
    return %arg0, %c0_i32 : i32, i32
  }
  func.func @transform_1(%arg0: i32) -> (i32, i32) {
    %c0_i32 = arith.constant 0 : i32
    %c0_i32_0 = arith.constant 0 : i32
    %c0_i32_1 = arith.constant 0 : i32
    return %c0_i32, %c0_i32_0 : i32, i32
  }
  func.func @transform_2(%arg0: i32) -> (i32, i32) {
    %c0_i32 = arith.constant 0 : i32
    %c0_i32_0 = arith.constant 0 : i32
    %c0_i32_1 = arith.constant 0 : i32
    return %c0_i32, %c0_i32_0 : i32, i32
  }
  func.func @transform_3(%arg0: i32) -> (i32, i32) {
    %c0_i32 = arith.constant 0 : i32
    %c0_i32_0 = arith.constant 0 : i32
    return %arg0, %c0_i32 : i32, i32
  }
}

</mosaic_0001>

<llo_original>
// kernel: multi_head_attention.5
$region0: #{multi_head_attention.5}
  #allocation0 [shape = 'u32[]', space=smem, size = 0x4, offset = 0x4, fixed_abs, tag = 'smem constant byte address 0x4 - core index']
  #allocation1 [shape = 'u32[144,128]{1,0:T(1,128)}', space=vmem, size = 0x12000, scoped, tag = 'internal scratch']
  %s0 = inlined_call_operand.vmem [shape: f32[16,32], index: 0, kind: input, shape index: {}]
  %s1 = inlined_call_operand.vmem [shape: bf16[32,32], index: 1, kind: input, shape index: {}]
  %s2 = inlined_call_operand.vmem [shape: f32[1,32], index: 2, kind: input, shape index: {}]
  %s3 = inlined_call_operand.vmem [shape: bf16[16,32], index: 3, kind: output, shape index: {}]
  %s4 = sld [smem:[#allocation0]]
  $region22: #{multi_head_attention.5} parent=0
    _
  %s6 = ssub.s32 1, %s4
  %s7 = scalar_select 0, %s6, %s4
  // Predicated region
  $region2: #{multi_head_attention.5} parent=0 // pred_check
    _
  $region3: #{multi_head_attention.5} parent=0 // pred_check_branch
    %9 = sbr.rel (0) target = $region5
  $region4: #{multi_head_attention.5} parent=0 // pred_region
    _
  $region5: #{multi_head_attention.5} parent=0 // pred_fallthru
    _
  // Predicated region
  $region6: #{multi_head_attention.5} parent=0 // pred_check
    _
  $region7: #{multi_head_attention.5} parent=0 // pred_check_branch
    %11 = sbr.rel (0) target = $region9
  $region8: #{multi_head_attention.5} parent=0 // pred_region
    _
  $region9: #{multi_head_attention.5} parent=0 // pred_fallthru
    _
  // Predicated region
  $region10: #{multi_head_attention.5} parent=0 // pred_check
    _
  $region11: #{multi_head_attention.5} parent=0 // pred_check_branch
    %13 = sbr.rel (0) target = $region13
  $region12: #{multi_head_attention.5} parent=0 // pred_region
    _
  $region13: #{multi_head_attention.5} parent=0 // pred_fallthru
    _
  %v15 = vld [vmem:[%s0] sm:$0xff]
  %v16 = vld [vmem:[%s0 + $0x8] sm:$0xff]
  %v17 = vpack.c.bf16 %v16, %v15
  %v18 = vld [vmem:[%s1] sm:$0xf]
  %v19 = vld [vmem:[%s1 + $0x4] sm:$0xf]
  %v20 = vld [vmem:[%s1 + $0x8] sm:$0xf]
  %v21 = vld [vmem:[%s1 + $0xc] sm:$0xf]
  %v22 = vld [vmem:[%s2] sm:$0x1]
  %v24 = vlaneseq
  %v25 = vshrl.u32 %v24, 7
  %v26 = vsub.s32 0, %v25
  %v27 = vrot.slane %v22, %v26
  %v33 = vunpack.c.l.b16 %v18
  %v34 = vunpack.c.l.b16 %v19
  %v35 = vunpack.c.l.b16 %v20
  %v36 = vunpack.c.l.b16 %v21
  %v37 = vpack.c.b16 %v34, %v33
  %v38 = vpack.c.b16 %v36, %v35
  %vm41 = vcmask 261120
  %v43 = vsel %vm41, %v17, 0
  %45 = vmatprep.subr.bf16.mxu0 0
  %46 = vmatpush1.bf16.msra.mxu0 %v37
  %47 = vmatprep.subr.bf16.mxu0 0
  %48 = vmatpush1.bf16.msra.mxu0 %v38
  %49 = vmatprep.subr.bf16.mxu0 0
  %50 = vmatpush1.bf16.msra.mxu0 0
  %51 = vmatprep.subr.bf16.mxu0 0
  %52 = vmatpush1.bf16.msra.mxu0 0
  %53 = vmatprep.subr.bf16.mxu0 0
  %54 = vmatpush1.bf16.msra.mxu0 0
  %55 = vmatprep.subr.bf16.mxu0 0
  %56 = vmatpush1.bf16.msra.mxu0 0
  %57 = vmatprep.subr.bf16.mxu0 0
  %58 = vmatpush1.bf16.msra.mxu0 0
  %59 = vmatprep.subr.bf16.mxu0 0
  %60 = vmatpush1.bf16.msra.mxu0 0
  %61 = vmatprep.subr.bf16.mxu0 0
  %62 = vmatpush1.bf16.msra.mxu0 0
  %63 = vmatprep.subr.bf16.mxu0 0
  %64 = vmatpush1.bf16.msra.mxu0 0
  %65 = vmatprep.subr.bf16.mxu0 0
  %66 = vmatpush1.bf16.msra.mxu0 0
  %67 = vmatprep.subr.bf16.mxu0 0
  %68 = vmatpush1.bf16.msra.mxu0 0
  %69 = vmatprep.subr.bf16.mxu0 0
  %70 = vmatpush1.bf16.msra.mxu0 0
  %71 = vmatprep.subr.bf16.mxu0 0
  %72 = vmatpush1.bf16.msra.mxu0 0
  %73 = vmatprep.subr.bf16.mxu0 0
  %74 = vmatpush1.bf16.msra.mxu0 0
  %75 = vmatprep.subr.bf16.mxu0 0
  %76 = vmatpush1.bf16.msra.mxu0 0
  %77 = vmatprep.mubr.bf16.mxu0 0
  %78 = vmatmul.mubr.bf16.gmra.mrb[0].mxu0 %v43
  %v79 = vpop.f32.mrb[0].mxu0
  %v80 = vadd.f32 %v27, %v79
  %v81 = vpop.f32.mrb[0].mxu0
  %v82 = vpop.f32.mrb[0].mxu0
  %v83 = vadd.f32 %v27, %v82
  %v84 = vpop.f32.mrb[0].mxu0
  %85 = vdwg.mxu0
  %v86 = vmax.f32 %v80, 0.0
  %v87 = vmax.f32 %v83, 0.0
  %v88 = vpack.c.bf16 %v87, %v86
  %v90 = vunpack.c.l.b16 %v88
  %v91 = vunpack.c.h.b16 %v88
  %v92 = vpack.c.b16 %v90, %v90
  %v93 = vpack.c.b16 %v91, %v91
  %vm96 = vcmask 257024
  %97 = vst.msk [vmem:[%s3] sm:$0xf] %vm96, %v92
  %98 = vst.msk [vmem:[%s3 + $0x4] sm:$0xf] %vm96, %v93
  // Predicated region
  $region14: #{multi_head_attention.5} parent=0 // pred_check
    _
  $region15: #{multi_head_attention.5} parent=0 // pred_check_branch
    %100 = sbr.rel (0) target = $region17
  $region16: #{multi_head_attention.5} parent=0 // pred_region
    _
  $region17: #{multi_head_attention.5} parent=0 // pred_fallthru
    _
  // Predicated region
  $region18: #{multi_head_attention.5} parent=0 // pred_check
    _
  $region19: #{multi_head_attention.5} parent=0 // pred_check_branch
    %102 = sbr.rel (0) target = $region21
  $region20: #{multi_head_attention.5} parent=0 // pred_region
    _
  $region21: #{multi_head_attention.5} parent=0 // pred_fallthru
    _

// kernel: multi_head_attention.9
$region0: #{multi_head_attention.9}
  #allocation0 [shape = 'u32[]', space=smem, size = 0x4, offset = 0x4, fixed_abs, tag = 'smem constant byte address 0x4 - core index']
  #allocation1 [shape = 'u32[144,128]{1,0:T(1,128)}', space=vmem, size = 0x12000, scoped, tag = 'internal scratch']
  %s0 = inlined_call_operand.vmem [shape: bf16[16,32], index: 0, kind: input, shape index: {}]
  %s1 = inlined_call_operand.vmem [shape: bf16[32,32], index: 1, kind: input, shape index: {}]
  %s2 = inlined_call_operand.vmem [shape: f32[1,32], index: 2, kind: input, shape index: {}]
  %s3 = inlined_call_operand.hbm [shape: f32[16,32], index: 3, kind: output, shape index: {}]
  %s4 = sld [smem:[#allocation0]]
  $region22: #{multi_head_attention.9} parent=0
    _
  %s6 = ssub.s32 1, %s4
  %s7 = scalar_select 0, %s6, %s4
  $region1: #{multi_head_attention.9} parent=0
    #allocation2 [shape = 'u8[8192]{0}', space=vmem, size = 0x2000, scoped, tag = 'output window, operand 0, single buffered']
    #allocation3 [shape = 's32[1]{0}', space=sflag, size = 0x4, scoped, tag = 'scoped memory for multi_head_attention.9']
    %8 = vsyncpa [#allocation3], 0
    // Predicated region
    $region2: #{multi_head_attention.9} parent=1 // pred_check
      _
    $region3: #{multi_head_attention.9} parent=1 // pred_check_branch
      %10 = sbr.rel (0) target = $region5
    $region4: #{multi_head_attention.9} parent=1 // pred_region
      _
    $region5: #{multi_head_attention.9} parent=1 // pred_fallthru
      _
    // Predicated region
    $region6: #{multi_head_attention.9} parent=1 // pred_check
      _
    $region7: #{multi_head_attention.9} parent=1 // pred_check_branch
      %12 = sbr.rel (0) target = $region9
    $region8: #{multi_head_attention.9} parent=1 // pred_region
      _
    $region9: #{multi_head_attention.9} parent=1 // pred_fallthru
      _
    // Predicated region
    $region10: #{multi_head_attention.9} parent=1 // pred_check
      _
    $region11: #{multi_head_attention.9} parent=1 // pred_check_branch
      %14 = sbr.rel (0) target = $region13
    $region12: #{multi_head_attention.9} parent=1 // pred_region
      _
    $region13: #{multi_head_attention.9} parent=1 // pred_fallthru
      _
    %v16 = vld [vmem:[%s0] sm:$0xf]
    %v17 = vld [vmem:[%s0 + $0x4] sm:$0xf]
    %v18 = vld [vmem:[%s1] sm:$0xf]
    %v19 = vld [vmem:[%s1 + $0x4] sm:$0xf]
    %v20 = vld [vmem:[%s1 + $0x8] sm:$0xf]
    %v21 = vld [vmem:[%s1 + $0xc] sm:$0xf]
    %v22 = vld [vmem:[%s2] sm:$0x1]
    %v24 = vlaneseq
    %v25 = vshrl.u32 %v24, 7
    %v26 = vsub.s32 0, %v25
    %v27 = vrot.slane %v22, %v26
    %v31 = vunpack.c.l.b16 %v16
    %v32 = vunpack.c.l.b16 %v17
    %v33 = vpack.c.b16 %v32, %v31
    %v38 = vunpack.c.l.b16 %v18
    %v39 = vunpack.c.l.b16 %v19
    %v40 = vunpack.c.l.b16 %v20
    %v41 = vunpack.c.l.b16 %v21
    %v42 = vpack.c.b16 %v39, %v38
    %v43 = vpack.c.b16 %v41, %v40
    %vm46 = vcmask 261120
    %v48 = vsel %vm46, %v33, 0
    %50 = vmatprep.subr.bf16.mxu0 0
    %51 = vmatpush1.bf16.msra.mxu0 %v42
    %52 = vmatprep.subr.bf16.mxu0 0
    %53 = vmatpush1.bf16.msra.mxu0 %v43
    %54 = vmatprep.subr.bf16.mxu0 0
    %55 = vmatpush1.bf16.msra.mxu0 0
    %56 = vmatprep.subr.bf16.mxu0 0
    %57 = vmatpush1.bf16.msra.mxu0 0
    %58 = vmatprep.subr.bf16.mxu0 0
    %59 = vmatpush1.bf16.msra.mxu0 0
    %60 = vmatprep.subr.bf16.mxu0 0
    %61 = vmatpush1.bf16.msra.mxu0 0
    %62 = vmatprep.subr.bf16.mxu0 0
    %63 = vmatpush1.bf16.msra.mxu0 0
    %64 = vmatprep.subr.bf16.mxu0 0
    %65 = vmatpush1.bf16.msra.mxu0 0
    %66 = vmatprep.subr.bf16.mxu0 0
    %67 = vmatpush1.bf16.msra.mxu0 0
    %68 = vmatprep.subr.bf16.mxu0 0
    %69 = vmatpush1.bf16.msra.mxu0 0
    %70 = vmatprep.subr.bf16.mxu0 0
    %71 = vmatpush1.bf16.msra.mxu0 0
    %72 = vmatprep.subr.bf16.mxu0 0
    %73 = vmatpush1.bf16.msra.mxu0 0
    %74 = vmatprep.subr.bf16.mxu0 0
    %75 = vmatpush1.bf16.msra.mxu0 0
    %76 = vmatprep.subr.bf16.mxu0 0
    %77 = vmatpush1.bf16.msra.mxu0 0
    %78 = vmatprep.subr.bf16.mxu0 0
    %79 = vmatpush1.bf16.msra.mxu0 0
    %80 = vmatprep.subr.bf16.mxu0 0
    %81 = vmatpush1.bf16.msra.mxu0 0
    %82 = vmatprep.mubr.bf16.mxu0 0
    %83 = vmatmul.mubr.bf16.gmra.mrb[0].mxu0 %v48
    %v84 = vpop.f32.mrb[0].mxu0
    %v85 = vadd.f32 %v27, %v84
    %v86 = vpop.f32.mrb[0].mxu0
    %v87 = vpop.f32.mrb[0].mxu0
    %v88 = vadd.f32 %v27, %v87
    %v89 = vpop.f32.mrb[0].mxu0
    %90 = vdwg.mxu0
    %v91 = vmax.f32 %v85, 0.0
    %v92 = vmax.f32 %v88, 0.0
    %93 = vst.msk [vmem:[#allocation2] sm:$0xff] %vm46, %v91
    %94 = vst.msk [vmem:[#allocation2 + $0x8] sm:$0xff] %vm46, %v92
    // Predicated region
    $region14: #{multi_head_attention.9} parent=1 // pred_check
      _
    $region15: #{multi_head_attention.9} parent=1 // pred_check_branch
      %96 = sbr.rel (0) target = $region17
    $region16: #{multi_head_attention.9} parent=1 // pred_region
      %s98 = ssub.s32 256, 256
      %99 = vsyncadd [#allocation3], %s98
      %s100 = sshll.u32 [#allocation2], 4
      %s101 = int_to_ptr.vmem [resolvable:$true] %s100
      %106 = dma.vmem_to_hbm [thread:$0]  %s101, 256, %s3, [#allocation3], 128, 128, 8
    $region17: #{multi_head_attention.9} parent=1 // pred_fallthru
      _
    // Predicated region
    $region18: #{multi_head_attention.9} parent=1 // pred_check
      _
    $region19: #{multi_head_attention.9} parent=1 // pred_check_branch
      %108 = sbr.rel (0) target = $region21
    $region20: #{multi_head_attention.9} parent=1 // pred_region
      %109 = dma.done [#allocation3], 256
    $region21: #{multi_head_attention.9} parent=1 // pred_fallthru
      _
    %110 = vsyncpa [#allocation3], 1

// kernel: multi_head_attention.8
$region0: #{multi_head_attention.8}
  #allocation0 [shape = 'u32[]', space=smem, size = 0x4, offset = 0x4, fixed_abs, tag = 'smem constant byte address 0x4 - core index']
  #allocation1 [shape = 'u32[144,128]{1,0:T(1,128)}', space=vmem, size = 0x12000, scoped, tag = 'internal scratch']
  %s0 = inlined_call_operand.vmem [shape: bf16[2,8,32], index: 0, kind: input, shape index: {}]
  %s1 = inlined_call_operand.vmem [shape: bf16[2,8,32], index: 1, kind: input, shape index: {}]
  %s2 = inlined_call_operand.vmem [shape: bf16[2,8,32], index: 2, kind: input, shape index: {}]
  %s3 = inlined_call_operand.vmem [shape: bf16[2,8,32], index: 3, kind: output, shape index: {0}]
  %s4 = inlined_call_operand.hbm [shape: f32[2,4,8,8], index: 4, kind: output, shape index: {1}]
  %5 = xla_tuple %s3, %s4
  %s6 = sld [smem:[#allocation0]]
  $region53: #{multi_head_attention.8} parent=0
    _
  %s8 = ssub.s32 1, %s6
  %s9 = scalar_select 0, %s8, %s6
  $region1: #{multi_head_attention.8} parent=0
    #allocation2 [shape = 'u8[32768]{0}', space=vmem, size = 0x8000, scoped, tag = 'output window, operand 1']
    #allocation3 [shape = 's32[2]{0}', space=sflag, size = 0x8, scoped, tag = 'scoped memory for multi_head_attention.8']
    %10 = vsyncpa [#allocation3], 0
    %s11 = scalar_lea.sflag [#allocation3], 1
    %12 = vsyncpa %s11, 0
    loop: start=0, step=1, limit=4
    $region2: #{multi_head_attention.8} parent=1 // loop_pre_header
      _
    $region3: #{multi_head_attention.8} parent=1 // loop_header
      %s14 = sphi 0, %s18
      %p15 = scmp.ge.s32.totalorder %s14, 4
      %s21 = sphi 0, %s33
      %s22 = sphi 0, %s29
      %s23 = sphi 0, %s21
      %s24 = sphi 0, %s22
      %s25 = sphi 0, %s23
      %s26 = sphi 0, %s24
      %s38 = sphi 0, %s40
      %s41 = sphi 0, %s38
      %s42 = sphi 0, %s41
      %s58 = sphi 0, %s42
      %s64 = sphi 0, %s66
      %s67 = sphi 0, %s64
      %s68 = sphi 0, %s67
      %s84 = sphi 0, %s68
      %s90 = sphi 0, %s92
      %s93 = sphi 0, %s90
      %s94 = sphi 0, %s93
      %s110 = sphi 0, %s94
      %s118 = sphi 0, %s120
      %s121 = sphi 0, %s118
      %s122 = sphi 0, %s121
      %s138 = sphi 0, %s122
      %s146 = sphi 0, %s148
      %s149 = sphi 0, %s146
      %s150 = sphi 0, %s149
      %s166 = sphi 0, %s150
    $region4: #{multi_head_attention.8} parent=1 // loop_header_branch
      %17 = sbr.rel (%p15) target = $region8
    $region5: #{multi_head_attention.8} parent=1 // loop_body
      %s19 = ssub.s32 %s14, 1
      %s20 = ssub.s32 %s14, 2
      %s27 = sadd.s32 1, %s22
      %p28 = scmp.ge.s32.totalorder %s27, 1
      %s29 = scalar_select %p28, 0, %s27
      %s30 = sadd.s32 1, %s21
      %s31 = scalar_select %p28, %s30, %s21
      %p32 = scmp.ge.s32.totalorder %s31, 2
      %s33 = scalar_select %p32, 0, %s31
      %s34 = ssub.s32 %s21, %s33
      %s35 = ssub.s32 %s22, %s29
      %s36 = sor.u32 %s34, %s35
      %p37 = scmp.eq.s32.totalorder %s36, 0
      %s39 = sadd.s32 %s38, 1
      %s40 = scalar_select %p37, %s38, %s39
      %p43 = pneg %p37
      %p44 = scmp.eq.s32.totalorder %s14, 1
      %p45 = por %p43, %p44
      %p46 = scmp.ne.s32.totalorder %s38, %s41
      %p47 = scmp.eq.s32.totalorder %s14, 0
      %p48 = por %p46, %p47
      %p49 = scmp.ne.s32.totalorder %s38, %s41
      %p50 = scmp.eq.s32.totalorder %s19, 1
      %p51 = por %p49, %p50
      %p52 = scmp.ne.s32.totalorder %s41, %s42
      %p53 = scmp.eq.s32.totalorder %s19, 0
      %p54 = por %p52, %p53
      %p55 = scmp.ne.s32.totalorder %s41, %s42
      %p56 = scmp.eq.s32.totalorder %s20, 1
      %p57 = por %p55, %p56
      %p59 = scmp.ne.s32.totalorder %s42, %s58
      %p60 = scmp.eq.s32.totalorder %s20, 0
      %p61 = por %p59, %p60
      %s62 = ssub.s32 %s21, %s33
      %p63 = scmp.eq.s32.totalorder %s62, 0
      %s65 = sadd.s32 %s64, 1
      %s66 = scalar_select %p63, %s64, %s65
      %p69 = pneg %p63
      %p70 = scmp.eq.s32.totalorder %s14, 1
      %p71 = por %p69, %p70
      %p72 = scmp.ne.s32.totalorder %s64, %s67
      %p73 = scmp.eq.s32.totalorder %s14, 0
      %p74 = por %p72, %p73
      %p75 = scmp.ne.s32.totalorder %s64, %s67
      %p76 = scmp.eq.s32.totalorder %s19, 1
      %p77 = por %p75, %p76
      %p78 = scmp.ne.s32.totalorder %s67, %s68
      %p79 = scmp.eq.s32.totalorder %s19, 0
      %p80 = por %p78, %p79
      %p81 = scmp.ne.s32.totalorder %s67, %s68
      %p82 = scmp.eq.s32.totalorder %s20, 1
      %p83 = por %p81, %p82
      %p85 = scmp.ne.s32.totalorder %s68, %s84
      %p86 = scmp.eq.s32.totalorder %s20, 0
      %p87 = por %p85, %p86
      %s88 = ssub.s32 %s21, %s33
      %p89 = scmp.eq.s32.totalorder %s88, 0
      %s91 = sadd.s32 %s90, 1
      %s92 = scalar_select %p89, %s90, %s91
      %p95 = pneg %p89
      %p96 = scmp.eq.s32.totalorder %s14, 1
      %p97 = por %p95, %p96
      %p98 = scmp.ne.s32.totalorder %s90, %s93
      %p99 = scmp.eq.s32.totalorder %s14, 0
      %p100 = por %p98, %p99
      %p101 = scmp.ne.s32.totalorder %s90, %s93
      %p102 = scmp.eq.s32.totalorder %s19, 1
      %p103 = por %p101, %p102
      %p104 = scmp.ne.s32.totalorder %s93, %s94
      %p105 = scmp.eq.s32.totalorder %s19, 0
      %p106 = por %p104, %p105
      %p107 = scmp.ne.s32.totalorder %s93, %s94
      %p108 = scmp.eq.s32.totalorder %s20, 1
      %p109 = por %p107, %p108
      %p111 = scmp.ne.s32.totalorder %s94, %s110
      %p112 = scmp.eq.s32.totalorder %s20, 0
      %p113 = por %p111, %p112
      %s114 = ssub.s32 %s21, %s33
      %s115 = ssub.s32 %s22, %s29
      %s116 = sor.u32 %s114, %s115
      %p117 = scmp.eq.s32.totalorder %s116, 0
      %s119 = sadd.s32 %s118, 1
      %s120 = scalar_select %p117, %s118, %s119
      %p123 = pneg %p117
      %p124 = scmp.eq.s32.totalorder %s14, 1
      %p125 = por %p123, %p124
      %p126 = scmp.ne.s32.totalorder %s118, %s121
      %p127 = scmp.eq.s32.totalorder %s14, 0
      %p128 = por %p126, %p127
      %p129 = scmp.ne.s32.totalorder %s118, %s121
      %p130 = scmp.eq.s32.totalorder %s19, 1
      %p131 = por %p129, %p130
      %p132 = scmp.ne.s32.totalorder %s121, %s122
      %p133 = scmp.eq.s32.totalorder %s19, 0
      %p134 = por %p132, %p133
      %p135 = scmp.ne.s32.totalorder %s121, %s122
      %p136 = scmp.eq.s32.totalorder %s20, 1
      %p137 = por %p135, %p136
      %p139 = scmp.ne.s32.totalorder %s122, %s138
      %p140 = scmp.eq.s32.totalorder %s20, 0
      %p141 = por %p139, %p140
      %s142 = ssub.s32 %s21, %s33
      %s143 = ssub.s32 %s22, %s29
      %s144 = sor.u32 %s142, %s143
      %p145 = scmp.eq.s32.totalorder %s144, 0
      %s147 = sadd.s32 %s146, 1
      %s148 = scalar_select %p145, %s146, %s147
      %p151 = pneg %p145
      %p152 = scmp.eq.s32.totalorder %s14, 1
      %p153 = por %p151, %p152
      %p154 = scmp.ne.s32.totalorder %s146, %s149
      %p155 = scmp.eq.s32.totalorder %s14, 0
      %p156 = por %p154, %p155
      %p157 = scmp.ne.s32.totalorder %s146, %s149
      %p158 = scmp.eq.s32.totalorder %s19, 1
      %p159 = por %p157, %p158
      %p160 = scmp.ne.s32.totalorder %s149, %s150
      %p161 = scmp.eq.s32.totalorder %s19, 0
      %p162 = por %p160, %p161
      %p163 = scmp.ne.s32.totalorder %s149, %s150
      %p164 = scmp.eq.s32.totalorder %s20, 1
      %p165 = por %p163, %p164
      %p167 = scmp.ne.s32.totalorder %s150, %s166
      %p168 = scmp.eq.s32.totalorder %s20, 0
      %p169 = por %p167, %p168
      %p170 = scmp.le.s32.totalorder 1, %s14
      %p171 = scmp.lt.s32.totalorder %s14, 3
      %p172 = pnand %p170, %p171
      %p173 = pneg %p172
      // Predicated region
      $region9: #{multi_head_attention.8} parent=5 // pred_check
        _
      $region10: #{multi_head_attention.8} parent=5 // pred_check_branch
        %175 = sbr.rel (%p172) target = $region12
      $region11: #{multi_head_attention.8} parent=5 // pred_region
        %s176 = ssub.s32 %s14, 1
      $region12: #{multi_head_attention.8} parent=5 // pred_fallthru
        _
      %p177 = scmp.lt.s32.totalorder %s14, 2
      // Predicated region
      $region13: #{multi_head_attention.8} parent=5 // pred_check
        %p178 = pneg %p177
      $region14: #{multi_head_attention.8} parent=5 // pred_check_branch
        %180 = sbr.rel (%p178) target = $region16
      $region15: #{multi_head_attention.8} parent=5 // pred_region
        // Predicated region
        $region17: #{multi_head_attention.8} parent=15 // pred_check
          %p181 = pneg %p48
        $region18: #{multi_head_attention.8} parent=15 // pred_check_branch
          %183 = sbr.rel (%p181) target = $region20
        $region19: #{multi_head_attention.8} parent=15 // pred_region
          %p184 = scmp.lt.s32.totalorder %s21, 1
          %s185 = scalar_select %p184, %s21, 1
          %p186 = scmp.lt.s32.totalorder %s22, 0
          %s187 = scalar_select %p186, %s22, 0
          %s188 = sadd.s32 %s187, %s185
          %s189 = smul.addr %s188, 4
          %s190 = scalar_lea.vmem %s0, %s189
        $region20: #{multi_head_attention.8} parent=15 // pred_fallthru
          _
        // Predicated region
        $region21: #{multi_head_attention.8} parent=15 // pred_check
          %p191 = pneg %p74
        $region22: #{multi_head_attention.8} parent=15 // pred_check_branch
          %193 = sbr.rel (%p191) target = $region24
        $region23: #{multi_head_attention.8} parent=15 // pred_region
          %p194 = scmp.lt.s32.totalorder %s21, 1
          %s195 = scalar_select %p194, %s21, 1
          %s196 = smul.addr %s195, 4
          %s197 = scalar_lea.vmem %s1, %s196
        $region24: #{multi_head_attention.8} parent=15 // pred_fallthru
          _
        // Predicated region
        $region25: #{multi_head_attention.8} parent=15 // pred_check
          %p198 = pneg %p100
        $region26: #{multi_head_attention.8} parent=15 // pred_check_branch
          %200 = sbr.rel (%p198) target = $region28
        $region27: #{multi_head_attention.8} parent=15 // pred_region
          %p201 = scmp.lt.s32.totalorder %s21, 1
          %s202 = scalar_select %p201, %s21, 1
          %s203 = smul.addr %s202, 4
          %s204 = scalar_lea.vmem %s2, %s203
        $region28: #{multi_head_attention.8} parent=15 // pred_fallthru
          _
      $region16: #{multi_head_attention.8} parent=5 // pred_fallthru
        _
      %p205 = scmp.le.s32.totalorder 1, %s14
      %p206 = scmp.lt.s32.totalorder %s14, 3
      %p207 = pnand %p205, %p206
      %p208 = pneg %p207
      // Predicated region
      $region29: #{multi_head_attention.8} parent=5 // pred_check
        _
      $region30: #{multi_head_attention.8} parent=5 // pred_check_branch
        %210 = sbr.rel (%p207) target = $region32
      $region31: #{multi_head_attention.8} parent=5 // pred_region
        %s211 = ssub.s32 %s14, 1
        %p212 = scmp.lt.s32.totalorder %s23, 1
        %s213 = scalar_select %p212, %s23, 1
        %p214 = scmp.lt.s32.totalorder %s24, 0
        %s215 = scalar_select %p214, %s24, 0
        %s216 = sadd.s32 %s215, %s213
        %s217 = smul.addr %s216, 4
        %s218 = scalar_lea.vmem %s0, %s217
        %p219 = pneg %p54
        %p220 = pneg %p51
        %p221 = scmp.lt.s32.totalorder %s23, 1
        %s222 = scalar_select %p221, %s23, 1
        %s223 = smul.addr %s222, 4
        %s224 = scalar_lea.vmem %s1, %s223
        %p225 = pneg %p80
        %p226 = pneg %p77
        %p227 = scmp.lt.s32.totalorder %s23, 1
        %s228 = scalar_select %p227, %s23, 1
        %s229 = smul.addr %s228, 4
        %s230 = scalar_lea.vmem %s2, %s229
        %p231 = pneg %p106
        %p232 = pneg %p103
        %p233 = pneg %p134
        %p234 = pneg %p131
        %p235 = scmp.lt.s32.totalorder %s23, 1
        %s236 = scalar_select %p235, %s23, 1
        %p237 = scmp.lt.s32.totalorder %s24, 0
        %s238 = scalar_select %p237, %s24, 0
        %s239 = sadd.s32 %s238, %s236
        %s240 = smul.addr %s239, 4
        %s241 = scalar_lea.vmem %s3, %s240
        %p242 = pneg %p162
        %p243 = pneg %p159
        %s244 = sand.u32 %s149, 1
        %s245 = scalar_lea.sflag [#allocation3], %s244
        %s246 = sand.u32 %s149, 1
        %s247 = smul.addr %s246, 32
        %s248 = scalar_lea.vmem [#allocation2], %s247
        %p249 = scmp.lt.s32.totalorder %s23, 1
        %s250 = scalar_select %p249, %s23, 1
        %p251 = scmp.lt.s32.totalorder %s24, 0
        %s252 = scalar_select %p251, %s24, 0
        %s253 = sadd.s32 %s252, %s250
        %s254 = smul.addr %s253, 4
        %s255 = scalar_lea.vmem %s0, %s254
        %p256 = scmp.lt.s32.totalorder %s23, 1
        %s257 = scalar_select %p256, %s23, 1
        %s258 = smul.addr %s257, 4
        %s259 = scalar_lea.vmem %s1, %s258
        %p260 = scmp.lt.s32.totalorder %s23, 1
        %s261 = scalar_select %p260, %s23, 1
        %s262 = smul.addr %s261, 4
        %s263 = scalar_lea.vmem %s2, %s262
        %p264 = scmp.lt.s32.totalorder %s23, 1
        %s265 = scalar_select %p264, %s23, 1
        %p266 = scmp.lt.s32.totalorder %s24, 0
        %s267 = scalar_select %p266, %s24, 0
        %s268 = sadd.s32 %s267, %s265
        %s269 = smul.addr %s268, 4
        %s270 = scalar_lea.vmem %s3, %s269
        %v272 = vld [vmem:[%s255] sm:$0xf]
        %v273 = vld [vmem:[%s259] sm:$0xf]
        %v274 = vld [vmem:[%s263] sm:$0xf]
        %vm275 = vcmask 64512
        %v277 = vsel %vm275, %v272, 0
        %v280 = vsel %vm275, %v273, 0
        %282 = vmatprep.subr.bf16.mxu0 0
        %283 = vmatpush1.bf16.xpose.msra.mxu0 %v280
        %284 = vmatprep.subr.bf16.mxu0 0
        %285 = vmatpush1.bf16.xpose.msra.mxu0 0
        %286 = vmatprep.subr.bf16.mxu0 0
        %287 = vmatpush1.bf16.xpose.msra.mxu0 0
        %288 = vmatprep.subr.bf16.mxu0 0
        %289 = vmatpush1.bf16.xpose.msra.mxu0 0
        %290 = vmatprep.subr.bf16.mxu0 0
        %291 = vmatpush1.bf16.xpose.msra.mxu0 0
        %292 = vmatprep.subr.bf16.mxu0 0
        %293 = vmatpush1.bf16.xpose.msra.mxu0 0
        %294 = vmatprep.subr.bf16.mxu0 0
        %295 = vmatpush1.bf16.xpose.msra.mxu0 0
        %296 = vmatprep.subr.bf16.mxu0 0
        %297 = vmatpush1.bf16.xpose.msra.mxu0 0
        %298 = vmatprep.subr.bf16.mxu0 0
        %299 = vmatpush1.bf16.xpose.msra.mxu0 0
        %300 = vmatprep.subr.bf16.mxu0 0
        %301 = vmatpush1.bf16.xpose.msra.mxu0 0
        %302 = vmatprep.subr.bf16.mxu0 0
        %303 = vmatpush1.bf16.xpose.msra.mxu0 0
        %304 = vmatprep.subr.bf16.mxu0 0
        %305 = vmatpush1.bf16.xpose.msra.mxu0 0
        %306 = vmatprep.subr.bf16.mxu0 0
        %307 = vmatpush1.bf16.xpose.msra.mxu0 0
        %308 = vmatprep.subr.bf16.mxu0 0
        %309 = vmatpush1.bf16.xpose.msra.mxu0 0
        %310 = vmatprep.subr.bf16.mxu0 0
        %311 = vmatpush1.bf16.xpose.msra.mxu0 0
        %312 = vmatprep.subr.bf16.mxu0 0
        %313 = vmatpush1.bf16.xpose.msra.mxu0 0
        %314 = vmatprep.mubr.bf16.mxu0 0
        %315 = vmatmul.mubr.bf16.gmra.mrb[0].mxu0 %v277
        %v316 = vpop.f32.mrb[0].mxu0
        %v317 = vadd.f32 0.0, %v316
        %v318 = vpop.f32.mrb[0].mxu0
        %v319 = vpop.f32.mrb[0].mxu0
        %v320 = vpop.f32.mrb[0].mxu0
        %321 = vdwg.mxu0
        %v322 = vsel %vm275, %v317, -inf
        %323 = vmax.xlane.f32.xlu0 %v322
        %v324 = vpop.xlane.xlu0 %323
        %v325 = vsub.f32 %v317, %v324
        %v326 = vmul.f32 %v325, 1.442695
        %v327 = vpow.pop %v326
        %v328 = vsel %vm275, %v327, 0.0
        %329 = vadd.xlane.f32.xlu0 %v328
        %v330 = vpop.xlane.xlu0 %329
        %v331 = vrcp.pop %v330
        %v332 = vmul.f32 %v327, %v331
        %333 = vst.msk [vmem:[%s248] sm:$0xff] %vm275, %v332
        %v334 = vpack.c.bf16 %v332, %v332
        %v336 = vsel %vm275, %v334, 0
        %vm338 = vcmask 1043456
        %v340 = vsel %vm338, %v274, 0
        %342 = vmatprep.subr.bf16.mxu0 0
        %343 = vmatpush1.bf16.msra.mxu0 %v340
        %344 = vmatprep.subr.bf16.mxu0 0
        %345 = vmatpush1.bf16.msra.mxu0 0
        %346 = vmatprep.subr.bf16.mxu0 0
        %347 = vmatpush1.bf16.msra.mxu0 0
        %348 = vmatprep.subr.bf16.mxu0 0
        %349 = vmatpush1.bf16.msra.mxu0 0
        %350 = vmatprep.subr.bf16.mxu0 0
        %351 = vmatpush1.bf16.msra.mxu0 0
        %352 = vmatprep.subr.bf16.mxu0 0
        %353 = vmatpush1.bf16.msra.mxu0 0
        %354 = vmatprep.subr.bf16.mxu0 0
        %355 = vmatpush1.bf16.msra.mxu0 0
        %356 = vmatprep.subr.bf16.mxu0 0
        %357 = vmatpush1.bf16.msra.mxu0 0
        %358 = vmatprep.subr.bf16.mxu0 0
        %359 = vmatpush1.bf16.msra.mxu0 0
        %360 = vmatprep.subr.bf16.mxu0 0
        %361 = vmatpush1.bf16.msra.mxu0 0
        %362 = vmatprep.subr.bf16.mxu0 0
        %363 = vmatpush1.bf16.msra.mxu0 0
        %364 = vmatprep.subr.bf16.mxu0 0
        %365 = vmatpush1.bf16.msra.mxu0 0
        %366 = vmatprep.subr.bf16.mxu0 0
        %367 = vmatpush1.bf16.msra.mxu0 0
        %368 = vmatprep.subr.bf16.mxu0 0
        %369 = vmatpush1.bf16.msra.mxu0 0
        %370 = vmatprep.subr.bf16.mxu0 0
        %371 = vmatpush1.bf16.msra.mxu0 0
        %372 = vmatprep.subr.bf16.mxu0 0
        %373 = vmatpush1.bf16.msra.mxu0 0
        %374 = vmatprep.mubr.bf16.mxu0 0
        %375 = vmatmul.mubr.bf16.gmra.mrb[0].mxu0 %v336
        %v376 = vpop.f32.mrb[0].mxu0
        %v377 = vadd.f32 0.0, %v376
        %v378 = vpop.f32.mrb[0].mxu0
        %v379 = vpop.f32.mrb[0].mxu0
        %v380 = vpop.f32.mrb[0].mxu0
        %381 = vdwg.mxu0
        %v382 = vpack.c.bf16 %v377, %v377
        %vm383 = vcmask 60416
        %384 = vst.msk [vmem:[%s270] sm:$0xf] %vm383, %v382
        %v386 = vunpack.c.l.b16 %v272
        %v387 = vpack.c.b16 %v386, %v386
        %388 = vrot.lane.b32.xlu0 %v387, 120
        %v389 = vpop.permute.xlu0 %388
        %v391 = vunpack.c.l.b16 %v273
        %v392 = vpack.c.b16 %v391, %v391
        %393 = vrot.lane.b32.xlu0 %v392, 120
        %v394 = vpop.permute.xlu0 %393
        %v396 = vsel %vm275, %v389, 0
        %v399 = vsel %vm275, %v394, 0
        %401 = vmatprep.subr.bf16.mxu0 0
        %402 = vmatpush1.bf16.xpose.msra.mxu0 %v399
        %403 = vmatprep.subr.bf16.mxu0 0
        %404 = vmatpush1.bf16.xpose.msra.mxu0 0
        %405 = vmatprep.subr.bf16.mxu0 0
        %406 = vmatpush1.bf16.xpose.msra.mxu0 0
        %407 = vmatprep.subr.bf16.mxu0 0
        %408 = vmatpush1.bf16.xpose.msra.mxu0 0
        %409 = vmatprep.subr.bf16.mxu0 0
        %410 = vmatpush1.bf16.xpose.msra.mxu0 0
        %411 = vmatprep.subr.bf16.mxu0 0
        %412 = vmatpush1.bf16.xpose.msra.mxu0 0
        %413 = vmatprep.subr.bf16.mxu0 0
        %414 = vmatpush1.bf16.xpose.msra.mxu0 0
        %415 = vmatprep.subr.bf16.mxu0 0
        %416 = vmatpush1.bf16.xpose.msra.mxu0 0
        %417 = vmatprep.subr.bf16.mxu0 0
        %418 = vmatpush1.bf16.xpose.msra.mxu0 0
        %419 = vmatprep.subr.bf16.mxu0 0
        %420 = vmatpush1.bf16.xpose.msra.mxu0 0
        %421 = vmatprep.subr.bf16.mxu0 0
        %422 = vmatpush1.bf16.xpose.msra.mxu0 0
        %423 = vmatprep.subr.bf16.mxu0 0
        %424 = vmatpush1.bf16.xpose.msra.mxu0 0
        %425 = vmatprep.subr.bf16.mxu0 0
        %426 = vmatpush1.bf16.xpose.msra.mxu0 0
        %427 = vmatprep.subr.bf16.mxu0 0
        %428 = vmatpush1.bf16.xpose.msra.mxu0 0
        %429 = vmatprep.subr.bf16.mxu0 0
        %430 = vmatpush1.bf16.xpose.msra.mxu0 0
        %431 = vmatprep.subr.bf16.mxu0 0
        %432 = vmatpush1.bf16.xpose.msra.mxu0 0
        %433 = vmatprep.mubr.bf16.mxu0 0
        %434 = vmatmul.mubr.bf16.gmra.mrb[0].mxu0 %v396
        %v435 = vpop.f32.mrb[0].mxu0
        %v436 = vadd.f32 0.0, %v435
        %v437 = vpop.f32.mrb[0].mxu0
        %v438 = vpop.f32.mrb[0].mxu0
        %v439 = vpop.f32.mrb[0].mxu0
        %440 = vdwg.mxu0
        %v441 = vsel %vm275, %v436, -inf
        %442 = vmax.xlane.f32.xlu0 %v441
        %v443 = vpop.xlane.xlu0 %442
        %v444 = vsub.f32 %v436, %v443
        %v445 = vmul.f32 %v444, 1.442695
        %v446 = vpow.pop %v445
        %v447 = vsel %vm275, %v446, 0.0
        %448 = vadd.xlane.f32.xlu0 %v447
        %v449 = vpop.xlane.xlu0 %448
        %v450 = vrcp.pop %v449
        %v451 = vmul.f32 %v446, %v450
        %s452 = scalar_lea.vmem %s248, 8 [#allocation2]
        %453 = vst.msk [vmem:[%s452] sm:$0xff] %vm275, %v451
        %v454 = vpack.c.bf16 %v451, %v451
        %v456 = vunpack.c.l.b16 %v274
        %v457 = vpack.c.b16 %v456, %v456
        %458 = vrot.lane.b32.xlu0 %v457, 120
        %v459 = vpop.permute.xlu0 %458
        %v461 = vsel %vm275, %v454, 0
        %v464 = vsel %vm338, %v459, 0
        %466 = vmatprep.subr.bf16.mxu0 0
        %467 = vmatpush1.bf16.msra.mxu0 %v464
        %468 = vmatprep.subr.bf16.mxu0 0
        %469 = vmatpush1.bf16.msra.mxu0 0
        %470 = vmatprep.subr.bf16.mxu0 0
        %471 = vmatpush1.bf16.msra.mxu0 0
        %472 = vmatprep.subr.bf16.mxu0 0
        %473 = vmatpush1.bf16.msra.mxu0 0
        %474 = vmatprep.subr.bf16.mxu0 0
        %475 = vmatpush1.bf16.msra.mxu0 0
        %476 = vmatprep.subr.bf16.mxu0 0
        %477 = vmatpush1.bf16.msra.mxu0 0
        %478 = vmatprep.subr.bf16.mxu0 0
        %479 = vmatpush1.bf16.msra.mxu0 0
        %480 = vmatprep.subr.bf16.mxu0 0
        %481 = vmatpush1.bf16.msra.mxu0 0
        %482 = vmatprep.subr.bf16.mxu0 0
        %483 = vmatpush1.bf16.msra.mxu0 0
        %484 = vmatprep.subr.bf16.mxu0 0
        %485 = vmatpush1.bf16.msra.mxu0 0
        %486 = vmatprep.subr.bf16.mxu0 0
        %487 = vmatpush1.bf16.msra.mxu0 0
        %488 = vmatprep.subr.bf16.mxu0 0
        %489 = vmatpush1.bf16.msra.mxu0 0
        %490 = vmatprep.subr.bf16.mxu0 0
        %491 = vmatpush1.bf16.msra.mxu0 0
        %492 = vmatprep.subr.bf16.mxu0 0
        %493 = vmatpush1.bf16.msra.mxu0 0
        %494 = vmatprep.subr.bf16.mxu0 0
        %495 = vmatpush1.bf16.msra.mxu0 0
        %496 = vmatprep.subr.bf16.mxu0 0
        %497 = vmatpush1.bf16.msra.mxu0 0
        %498 = vmatprep.mubr.bf16.mxu0 0
        %499 = vmatmul.mubr.bf16.gmra.mrb[0].mxu0 %v461
        %v500 = vpop.f32.mrb[0].mxu0
        %v501 = vadd.f32 0.0, %v500
        %v502 = vpop.f32.mrb[0].mxu0
        %v503 = vpop.f32.mrb[0].mxu0
        %v504 = vpop.f32.mrb[0].mxu0
        %505 = vdwg.mxu0
        %v506 = vpack.c.bf16 %v501, %v501
        %v508 = vunpack.c.l.b16 %v506
        %v509 = vpack.c.b16 %v508, %v508
        %510 = vrot.lane.b32.xlu0 %v509, 8
        %v511 = vpop.permute.xlu0 %510
        %vm513 = vcmask 126016
        %514 = vst.msk [vmem:[%s270] sm:$0xf] %vm513, %v511
        %515 = vrot.lane.b32.xlu0 %v387, 112
        %v516 = vpop.permute.xlu0 %515
        %517 = vrot.lane.b32.xlu0 %v392, 112
        %v518 = vpop.permute.xlu0 %517
        %v520 = vsel %vm275, %v516, 0
        %v523 = vsel %vm275, %v518, 0
        %525 = vmatprep.subr.bf16.mxu0 0
        %526 = vmatpush1.bf16.xpose.msra.mxu0 %v523
        %527 = vmatprep.subr.bf16.mxu0 0
        %528 = vmatpush1.bf16.xpose.msra.mxu0 0
        %529 = vmatprep.subr.bf16.mxu0 0
        %530 = vmatpush1.bf16.xpose.msra.mxu0 0
        %531 = vmatprep.subr.bf16.mxu0 0
        %532 = vmatpush1.bf16.xpose.msra.mxu0 0
        %533 = vmatprep.subr.bf16.mxu0 0
        %534 = vmatpush1.bf16.xpose.msra.mxu0 0
        %535 = vmatprep.subr.bf16.mxu0 0
        %536 = vmatpush1.bf16.xpose.msra.mxu0 0
        %537 = vmatprep.subr.bf16.mxu0 0
        %538 = vmatpush1.bf16.xpose.msra.mxu0 0
        %539 = vmatprep.subr.bf16.mxu0 0
        %540 = vmatpush1.bf16.xpose.msra.mxu0 0
        %541 = vmatprep.subr.bf16.mxu0 0
        %542 = vmatpush1.bf16.xpose.msra.mxu0 0
        %543 = vmatprep.subr.bf16.mxu0 0
        %544 = vmatpush1.bf16.xpose.msra.mxu0 0
        %545 = vmatprep.subr.bf16.mxu0 0
        %546 = vmatpush1.bf16.xpose.msra.mxu0 0
        %547 = vmatprep.subr.bf16.mxu0 0
        %548 = vmatpush1.bf16.xpose.msra.mxu0 0
        %549 = vmatprep.subr.bf16.mxu0 0
        %550 = vmatpush1.bf16.xpose.msra.mxu0 0
        %551 = vmatprep.subr.bf16.mxu0 0
        %552 = vmatpush1.bf16.xpose.msra.mxu0 0
        %553 = vmatprep.subr.bf16.mxu0 0
        %554 = vmatpush1.bf16.xpose.msra.mxu0 0
        %555 = vmatprep.subr.bf16.mxu0 0
        %556 = vmatpush1.bf16.xpose.msra.mxu0 0
        %557 = vmatprep.mubr.bf16.mxu0 0
        %558 = vmatmul.mubr.bf16.gmra.mrb[0].mxu0 %v520
        %v559 = vpop.f32.mrb[0].mxu0
        %v560 = vadd.f32 0.0, %v559
        %v561 = vpop.f32.mrb[0].mxu0
        %v562 = vpop.f32.mrb[0].mxu0
        %v563 = vpop.f32.mrb[0].mxu0
        %564 = vdwg.mxu0
        %v565 = vsel %vm275, %v560, -inf
        %566 = vmax.xlane.f32.xlu0 %v565
        %v567 = vpop.xlane.xlu0 %566
        %v568 = vsub.f32 %v560, %v567
        %v569 = vmul.f32 %v568, 1.442695
        %v570 = vpow.pop %v569
        %v571 = vsel %vm275, %v570, 0.0
        %572 = vadd.xlane.f32.xlu0 %v571
        %v573 = vpop.xlane.xlu0 %572
        %v574 = vrcp.pop %v573
        %v575 = vmul.f32 %v570, %v574
        %s576 = scalar_lea.vmem %s248, 16 [#allocation2]
        %577 = vst.msk [vmem:[%s576] sm:$0xff] %vm275, %v575
        %v578 = vpack.c.bf16 %v575, %v575
        %579 = vrot.lane.b32.xlu0 %v457, 112
        %v580 = vpop.permute.xlu0 %579
        %v582 = vsel %vm275, %v578, 0
        %v585 = vsel %vm338, %v580, 0
        %587 = vmatprep.subr.bf16.mxu0 0
        %588 = vmatpush1.bf16.msra.mxu0 %v585
        %589 = vmatprep.subr.bf16.mxu0 0
        %590 = vmatpush1.bf16.msra.mxu0 0
        %591 = vmatprep.subr.bf16.mxu0 0
        %592 = vmatpush1.bf16.msra.mxu0 0
        %593 = vmatprep.subr.bf16.mxu0 0
        %594 = vmatpush1.bf16.msra.mxu0 0
        %595 = vmatprep.subr.bf16.mxu0 0
        %596 = vmatpush1.bf16.msra.mxu0 0
        %597 = vmatprep.subr.bf16.mxu0 0
        %598 = vmatpush1.bf16.msra.mxu0 0
        %599 = vmatprep.subr.bf16.mxu0 0
        %600 = vmatpush1.bf16.msra.mxu0 0
        %601 = vmatprep.subr.bf16.mxu0 0
        %602 = vmatpush1.bf16.msra.mxu0 0
        %603 = vmatprep.subr.bf16.mxu0 0
        %604 = vmatpush1.bf16.msra.mxu0 0
        %605 = vmatprep.subr.bf16.mxu0 0
        %606 = vmatpush1.bf16.msra.mxu0 0
        %607 = vmatprep.subr.bf16.mxu0 0
        %608 = vmatpush1.bf16.msra.mxu0 0
        %609 = vmatprep.subr.bf16.mxu0 0
        %610 = vmatpush1.bf16.msra.mxu0 0
        %611 = vmatprep.subr.bf16.mxu0 0
        %612 = vmatpush1.bf16.msra.mxu0 0
        %613 = vmatprep.subr.bf16.mxu0 0
        %614 = vmatpush1.bf16.msra.mxu0 0
        %615 = vmatprep.subr.bf16.mxu0 0
        %616 = vmatpush1.bf16.msra.mxu0 0
        %617 = vmatprep.subr.bf16.mxu0 0
        %618 = vmatpush1.bf16.msra.mxu0 0
        %619 = vmatprep.mubr.bf16.mxu0 0
        %620 = vmatmul.mubr.bf16.gmra.mrb[0].mxu0 %v582
        %v621 = vpop.f32.mrb[0].mxu0
        %v622 = vadd.f32 0.0, %v621
        %v623 = vpop.f32.mrb[0].mxu0
        %v624 = vpop.f32.mrb[0].mxu0
        %v625 = vpop.f32.mrb[0].mxu0
        %626 = vdwg.mxu0
        %v627 = vpack.c.bf16 %v622, %v622
        %v629 = vunpack.c.l.b16 %v627
        %v630 = vpack.c.b16 %v629, %v629
        %631 = vrot.lane.b32.xlu0 %v630, 16
        %v632 = vpop.permute.xlu0 %631
        %vm634 = vcmask 191616
        %635 = vst.msk [vmem:[%s270] sm:$0xf] %vm634, %v632
        %636 = vrot.lane.b32.xlu0 %v387, 104
        %v637 = vpop.permute.xlu0 %636
        %638 = vrot.lane.b32.xlu0 %v392, 104
        %v639 = vpop.permute.xlu0 %638
        %v641 = vsel %vm275, %v637, 0
        %v644 = vsel %vm275, %v639, 0
        %646 = vmatprep.subr.bf16.mxu0 0
        %647 = vmatpush1.bf16.xpose.msra.mxu0 %v644
        %648 = vmatprep.subr.bf16.mxu0 0
        %649 = vmatpush1.bf16.xpose.msra.mxu0 0
        %650 = vmatprep.subr.bf16.mxu0 0
        %651 = vmatpush1.bf16.xpose.msra.mxu0 0
        %652 = vmatprep.subr.bf16.mxu0 0
        %653 = vmatpush1.bf16.xpose.msra.mxu0 0
        %654 = vmatprep.subr.bf16.mxu0 0
        %655 = vmatpush1.bf16.xpose.msra.mxu0 0
        %656 = vmatprep.subr.bf16.mxu0 0
        %657 = vmatpush1.bf16.xpose.msra.mxu0 0
        %658 = vmatprep.subr.bf16.mxu0 0
        %659 = vmatpush1.bf16.xpose.msra.mxu0 0
        %660 = vmatprep.subr.bf16.mxu0 0
        %661 = vmatpush1.bf16.xpose.msra.mxu0 0
        %662 = vmatprep.subr.bf16.mxu0 0
        %663 = vmatpush1.bf16.xpose.msra.mxu0 0
        %664 = vmatprep.subr.bf16.mxu0 0
        %665 = vmatpush1.bf16.xpose.msra.mxu0 0
        %666 = vmatprep.subr.bf16.mxu0 0
        %667 = vmatpush1.bf16.xpose.msra.mxu0 0
        %668 = vmatprep.subr.bf16.mxu0 0
        %669 = vmatpush1.bf16.xpose.msra.mxu0 0
        %670 = vmatprep.subr.bf16.mxu0 0
        %671 = vmatpush1.bf16.xpose.msra.mxu0 0
        %672 = vmatprep.subr.bf16.mxu0 0
        %673 = vmatpush1.bf16.xpose.msra.mxu0 0
        %674 = vmatprep.subr.bf16.mxu0 0
        %675 = vmatpush1.bf16.xpose.msra.mxu0 0
        %676 = vmatprep.subr.bf16.mxu0 0
        %677 = vmatpush1.bf16.xpose.msra.mxu0 0
        %678 = vmatprep.mubr.bf16.mxu0 0
        %679 = vmatmul.mubr.bf16.gmra.mrb[0].mxu0 %v641
        %v680 = vpop.f32.mrb[0].mxu0
        %v681 = vadd.f32 0.0, %v680
        %v682 = vpop.f32.mrb[0].mxu0
        %v683 = vpop.f32.mrb[0].mxu0
        %v684 = vpop.f32.mrb[0].mxu0
        %685 = vdwg.mxu0
        %v686 = vsel %vm275, %v681, -inf
        %687 = vmax.xlane.f32.xlu0 %v686
        %v688 = vpop.xlane.xlu0 %687
        %v689 = vsub.f32 %v681, %v688
        %v690 = vmul.f32 %v689, 1.442695
        %v691 = vpow.pop %v690
        %v692 = vsel %vm275, %v691, 0.0
        %693 = vadd.xlane.f32.xlu0 %v692
        %v694 = vpop.xlane.xlu0 %693
        %v695 = vrcp.pop %v694
        %v696 = vmul.f32 %v691, %v695
        %s697 = scalar_lea.vmem %s248, 24 [#allocation2]
        %698 = vst.msk [vmem:[%s697] sm:$0xff] %vm275, %v696
        %v699 = vpack.c.bf16 %v696, %v696
        %700 = vrot.lane.b32.xlu0 %v457, 104
        %v701 = vpop.permute.xlu0 %700
        %v703 = vsel %vm275, %v699, 0
        %v706 = vsel %vm338, %v701, 0
        %708 = vmatprep.subr.bf16.mxu0 0
        %709 = vmatpush1.bf16.msra.mxu0 %v706
        %710 = vmatprep.subr.bf16.mxu0 0
        %711 = vmatpush1.bf16.msra.mxu0 0
        %712 = vmatprep.subr.bf16.mxu0 0
        %713 = vmatpush1.bf16.msra.mxu0 0
        %714 = vmatprep.subr.bf16.mxu0 0
        %715 = vmatpush1.bf16.msra.mxu0 0
        %716 = vmatprep.subr.bf16.mxu0 0
        %717 = vmatpush1.bf16.msra.mxu0 0
        %718 = vmatprep.subr.bf16.mxu0 0
        %719 = vmatpush1.bf16.msra.mxu0 0
        %720 = vmatprep.subr.bf16.mxu0 0
        %721 = vmatpush1.bf16.msra.mxu0 0
        %722 = vmatprep.subr.bf16.mxu0 0
        %723 = vmatpush1.bf16.msra.mxu0 0
        %724 = vmatprep.subr.bf16.mxu0 0
        %725 = vmatpush1.bf16.msra.mxu0 0
        %726 = vmatprep.subr.bf16.mxu0 0
        %727 = vmatpush1.bf16.msra.mxu0 0
        %728 = vmatprep.subr.bf16.mxu0 0
        %729 = vmatpush1.bf16.msra.mxu0 0
        %730 = vmatprep.subr.bf16.mxu0 0
        %731 = vmatpush1.bf16.msra.mxu0 0
        %732 = vmatprep.subr.bf16.mxu0 0
        %733 = vmatpush1.bf16.msra.mxu0 0
        %734 = vmatprep.subr.bf16.mxu0 0
        %735 = vmatpush1.bf16.msra.mxu0 0
        %736 = vmatprep.subr.bf16.mxu0 0
        %737 = vmatpush1.bf16.msra.mxu0 0
        %738 = vmatprep.subr.bf16.mxu0 0
        %739 = vmatpush1.bf16.msra.mxu0 0
        %740 = vmatprep.mubr.bf16.mxu0 0
        %741 = vmatmul.mubr.bf16.gmra.mrb[0].mxu0 %v703
        %v742 = vpop.f32.mrb[0].mxu0
        %v743 = vadd.f32 0.0, %v742
        %v744 = vpop.f32.mrb[0].mxu0
        %v745 = vpop.f32.mrb[0].mxu0
        %v746 = vpop.f32.mrb[0].mxu0
        %747 = vdwg.mxu0
        %v748 = vpack.c.bf16 %v743, %v743
        %v750 = vunpack.c.l.b16 %v748
        %v751 = vpack.c.b16 %v750, %v750
        %752 = vrot.lane.b32.xlu0 %v751, 24
        %v753 = vpop.permute.xlu0 %752
        %vm755 = vcmask 257216
        %756 = vst.msk [vmem:[%s270] sm:$0xf] %vm755, %v753
        %p757 = scmp.lt.s32.totalorder %s23, 1
        %s758 = scalar_select %p757, %s23, 1
        %p759 = scmp.lt.s32.totalorder %s24, 0
        %s760 = scalar_select %p759, %s24, 0
        %s761 = sadd.s32 %s760, %s758
        %s762 = smul.addr %s761, 4
        %s763 = scalar_lea.vmem %s3, %s762
        %s764 = sand.u32 %s149, 1
        %s765 = scalar_lea.sflag [#allocation3], %s764
        %s766 = sand.u32 %s149, 1
        %s767 = smul.addr %s766, 32
        %s768 = scalar_lea.vmem [#allocation2], %s767
        // Predicated region
        $region33: #{multi_head_attention.8} parent=31 // pred_check
          %p769 = pneg %p131
        $region34: #{multi_head_attention.8} parent=31 // pred_check_branch
          %771 = sbr.rel (%p769) target = $region36
        $region35: #{multi_head_attention.8} parent=31 // pred_region
          _
        $region36: #{multi_head_attention.8} parent=31 // pred_fallthru
          _
        // Predicated region
        $region37: #{multi_head_attention.8} parent=31 // pred_check
          %p772 = pneg %p159
        $region38: #{multi_head_attention.8} parent=31 // pred_check_branch
          %774 = sbr.rel (%p772) target = $region40
        $region39: #{multi_head_attention.8} parent=31 // pred_region
          %s776 = ssub.s32 512, 512
          %777 = vsyncadd %s765, %s776
          %s778 = smul.addr %s23, 4
          %s779 = sadd.s32 %s24, %s778
          %s780 = smul.addr %s779, 128
          %s781 = scalar_lea.hbm %s4, %s780
          %s782 = sshll.u32 %s768, 4
          %s783 = int_to_ptr.vmem [resolvable:$true] %s782
          %788 = dma.vmem_to_hbm [thread:$0]  %s783, 512, %s781, %s765, 128, 128, 8
        $region40: #{multi_head_attention.8} parent=31 // pred_fallthru
          _
      $region32: #{multi_head_attention.8} parent=5 // pred_fallthru
        _
      %p789 = scmp.le.s32.totalorder 2, %s14
      // Predicated region
      $region41: #{multi_head_attention.8} parent=5 // pred_check
        %p790 = pneg %p789
      $region42: #{multi_head_attention.8} parent=5 // pred_check_branch
        %792 = sbr.rel (%p790) target = $region44
      $region43: #{multi_head_attention.8} parent=5 // pred_region
        %s793 = ssub.s32 %s14, 2
        // Predicated region
        $region45: #{multi_head_attention.8} parent=43 // pred_check
          %p794 = pneg %p137
        $region46: #{multi_head_attention.8} parent=43 // pred_check_branch
          %796 = sbr.rel (%p794) target = $region48
        $region47: #{multi_head_attention.8} parent=43 // pred_region
          %p797 = scmp.lt.s32.totalorder %s25, 1
          %s798 = scalar_select %p797, %s25, 1
          %p799 = scmp.lt.s32.totalorder %s26, 0
          %s800 = scalar_select %p799, %s26, 0
          %s801 = sadd.s32 %s800, %s798
          %s802 = smul.addr %s801, 4
          %s803 = scalar_lea.vmem %s3, %s802
        $region48: #{multi_head_attention.8} parent=43 // pred_fallthru
          _
        // Predicated region
        $region49: #{multi_head_attention.8} parent=43 // pred_check
          %p804 = pneg %p165
        $region50: #{multi_head_attention.8} parent=43 // pred_check_branch
          %806 = sbr.rel (%p804) target = $region52
        $region51: #{multi_head_attention.8} parent=43 // pred_region
          %s807 = sand.u32 %s150, 1
          %s808 = scalar_lea.sflag [#allocation3], %s807
          %s809 = sand.u32 %s150, 1
          %s810 = smul.addr %s809, 32
          %s811 = scalar_lea.vmem [#allocation2], %s810
          %812 = dma.done %s808, 512
        $region52: #{multi_head_attention.8} parent=43 // pred_fallthru
          _
      $region44: #{multi_head_attention.8} parent=5 // pred_fallthru
        _
    $region6: #{multi_head_attention.8} parent=1 // loop_footer
      %s18 = sadd.s32 1, %s14
    $region7: #{multi_head_attention.8} parent=1 // loop_footer_branch
      %13 = sbr.rel target = $region3
    $region8: #{multi_head_attention.8} parent=1 // loop_exit
      _
    %813 = vsyncpa [#allocation3], 1
    %s814 = scalar_lea.sflag [#allocation3], 1
    %815 = vsyncpa %s814, 1

</llo_original>
